<compile_context>
chip_gen: v6e
topology: v6e:2x2x1
jax: 0.10.0
libtpu: 0.0.40
codegen_flags: <defaults>
</compile_context>

<pallas_src>
import math
from functools import partial

import jax
import jax.numpy as jnp
from jax.experimental import pallas as pl
from jax.experimental.pallas import tpu as pltpu


# ----------------------------- Pallas kernel -----------------------------

def _fused_ensemble_kernel(x_ref, wab_ref, bab_ref, w1_ref, b1_ref,
                           w2_ref, b2_ref, o_ref):
    """Fused MyEnsemble forward on one VMEM-resident tile.

    h = x @ [wA|wB] + [bA|bB]            # backbone features + torch.cat
    z = relu(h) @ W1 + b1                # self.classifier(F.relu(x))
    o = relu(z) @ W2 + b2                # self.classifier2(F.relu(x))

    x arrives f32 and is cast to the weight dtype (bf16) in-kernel, directly
    before the first MXU op. All matmuls accumulate in f32
    (preferred_element_type); relus / bias adds stay f32 on the VPU.
    """
    compute_dtype = wab_ref.dtype

    # Backbone feature extraction (pre-concatenated weights) + bias.
    x = x_ref[...].astype(compute_dtype)
    h = jnp.dot(x, wab_ref[...],
                preferred_element_type=jnp.float32) + bab_ref[...]

    # classifier(F.relu(h))
    z = jnp.dot(jnp.maximum(h, 0.0).astype(compute_dtype), w1_ref[...],
                preferred_element_type=jnp.float32) + b1_ref[...]

    # classifier2(F.relu(z))
    o = jnp.dot(jnp.maximum(z, 0.0).astype(compute_dtype), w2_ref[...],
                preferred_element_type=jnp.float32) + b2_ref[...]

    o_ref[...] = o.astype(o_ref.dtype)


def _vmem_spec():
    return pl.BlockSpec(memory_space=pltpu.MemorySpace.VMEM)


# ----------------------------- Parameter init -----------------------------

def _round_up(n, m):
    return -(-n // m) * m


def _linear_init(key, fan_in, fan_out):
    """PyTorch nn.Linear default init: U(-1/sqrt(fan_in), 1/sqrt(fan_in))."""
    kw, kb = jax.random.split(key)
    bound = 1.0 / math.sqrt(fan_in)
    w = jax.random.uniform(kw, (fan_in, fan_out), jnp.float32, -bound, bound)
    b = jax.random.uniform(kb, (fan_out,), jnp.float32, -bound, bound)
    return w, b


def make_params(key, in_features, a, b_feat, nb_classes=2, hidden=755,
                param_dtype=jnp.bfloat16):
    """Build logical (PyTorch-equivalent) params, then pre-concat + pad.

    Weights are stored (in, out) so the kernel computes x @ W + b, equivalent
    to PyTorch's x @ W.T + b. Every lane (last) dim is zero-padded to a
    multiple of 128; K is padded too. Padded weight rows/cols and bias entries
    are zero, so padding is numerically neutral through relu and matmul.
    Weights are cast to bf16 (MXU-native); biases stay f32 and are added to
    the f32 accumulator.
    """
    kA, kB, k1, k2 = jax.random.split(key, 4)
    wA, bA = _linear_init(kA, in_features, a)          # modelA feature extractor
    wB, bB = _linear_init(kB, in_features, b_feat)     # modelB feature extractor
    w1, b1 = _linear_init(k1, a + b_feat, hidden)      # self.classifier
    w2, b2 = _linear_init(k2, hidden, nb_classes)      # self.classifier2

    K_pad = _round_up(in_features, 128)
    F_pad = _round_up(a + b_feat, 128)                 # 80  -> 128
    H_pad = _round_up(hidden, 128)                     # 755 -> 768
    C_pad = _round_up(nb_classes, 128)                 # 2   -> 128

    # Pre-concatenate [wA | wB] so cat(x1, x2) becomes one matmul in-kernel.
    wAB = jnp.concatenate([wA, wB], axis=1)
    bAB = jnp.concatenate([bA, bB], axis=0)

    wAB_p = jnp.zeros((K_pad, F_pad), jnp.float32).at[:in_features, :a + b_feat].set(wAB)
    bAB_p = jnp.zeros((1, F_pad), jnp.float32).at[0, :a + b_feat].set(bAB)
    w1_p = jnp.zeros((F_pad, H_pad), jnp.float32).at[:a + b_feat, :hidden].set(w1)
    b1_p = jnp.zeros((1, H_pad), jnp.float32).at[0, :hidden].set(b1)
    w2_p = jnp.zeros((H_pad, C_pad), jnp.float32).at[:hidden, :nb_classes].set(w2)
    b2_p = jnp.zeros((1, C_pad), jnp.float32).at[0, :nb_classes].set(b2)

    return dict(
        wAB=wAB_p.astype(param_dtype), bAB=bAB_p,
        w1=w1_p.astype(param_dtype), b1=b1_p,
        w2=w2_p.astype(param_dtype), b2=b2_p,
    )


# ----------------------------- Forward pass -----------------------------

# Batch tile for the gridded (large-B) path: multiple of the bf16 (16, 128)
# tile, big enough to saturate MXU rows on v5e/v6e/v7x.
_BATCH_TILE = 256


@partial(jax.jit, static_argnames=("nb_classes",))
def my_ensemble_forward(params, x, nb_classes=2):
    B = x.shape[0]
    x_flat = x.reshape(B, -1)                          # flatten NCHW (f32)
    K = x_flat.shape[1]

    K_pad = params["wAB"].shape[0]
    C_pad = params["w2"].shape[1]

    # Only the contraction (lane) dim ever needs padding; in the common case
    # K is already a multiple of 128 and this is a no-op branch.
    if K != K_pad:
        x_flat = jnp.pad(x_flat, ((0, 0), (0, K_pad - K)))

    weight_args = (params["wAB"], params["bAB"], params["w1"], params["b1"],
                   params["w2"], params["b2"])

    if B <= _BATCH_TILE:
        # Small batch: gridless, whole-array VMEM residency (<1 MiB total).
        # x goes in unpadded/uncast; full-array block shape is legal for B<8.
        out_pad = pl.pallas_call(
            _fused_ensemble_kernel,
            out_shape=jax.ShapeDtypeStruct((B, C_pad), jnp.float32),
            in_specs=[_vmem_spec()] * 7,
            out_specs=_vmem_spec(),
        )(x_flat, *weight_args)
        return out_pad[:, :nb_classes]

    # Large batch (after request batching): 1-D parallel grid over batch so
    # v7x's two TensorCores split the rows; constant-index weight specs keep
    # the weights VMEM-resident across grid steps (no re-DMA per step).
    Bp = _round_up(B, _BATCH_TILE)
    if Bp != B:
        x_flat = jnp.pad(x_flat, ((0, Bp - B), (0, 0)))   # inert zero rows

    def _const_spec(arr):
        return pl.BlockSpec(arr.shape, lambda i: (0, 0))

    out_pad = pl.pallas_call(
        _fused_ensemble_kernel,
        out_shape=jax.ShapeDtypeStruct((Bp, C_pad), jnp.float32),
        grid=(Bp // _BATCH_TILE,),
        in_specs=[pl.BlockSpec((_BATCH_TILE, K_pad), lambda i: (i, 0))]
                 + [_const_spec(w) for w in weight_args],
        out_specs=pl.BlockSpec((_BATCH_TILE, C_pad), lambda i: (i, 0)),
        compiler_params=pltpu.CompilerParams(
            dimension_semantics=("parallel",)),
    )(x_flat, *weight_args)

    return out_pad[:B, :nb_classes]


# ----------------------------- Main -----------------------------

if __name__ == "__main__":
    B, C, H, W = 2, 4, 16, 16          # small NCHW input
    a, b_feat, nb_classes = 32, 48, 2  # feature dims of modelA / modelB

    key = jax.random.PRNGKey(0)
    k_x, k_p = jax.random.split(key)

    x = jax.random.normal(k_x, (B, C, H, W), dtype=jnp.float32)
    params = make_params(k_p, C * H * W, a, b_feat, nb_classes)

    out = my_ensemble_forward(params, x, nb_classes=nb_classes)
    out = jax.block_until_ready(out)

    assert out.shape == (B, nb_classes)
    assert out.dtype == jnp.float32
    print("KERNEL_OK")
</pallas_src>

<mosaic_0001>
module attributes {stable_mosaic.version = 11 : i64} {
  func.func @_fused_ensemble_kernel(%arg0: memref<2x1024xf32, #tpu.memory_space<vmem>>, %arg1: memref<1024x128xbf16, #tpu.memory_space<vmem>>, %arg2: memref<1x128xf32, #tpu.memory_space<vmem>>, %arg3: memref<128x768xbf16, #tpu.memory_space<vmem>>, %arg4: memref<1x768xf32, #tpu.memory_space<vmem>>, %arg5: memref<768x128xbf16, #tpu.memory_space<vmem>>, %arg6: memref<1x128xf32, #tpu.memory_space<vmem>>, %arg7: memref<2x128xf32, #tpu.memory_space<vmem>>) attributes {dimension_semantics = [], scalar_prefetch = 0 : i64, scratch_operands = 0 : i64, tpu.core_type = #tpu.core_type<tc>} {
    %c0 = arith.constant 0 : index
    %c0_0 = arith.constant 0 : index
    %0 = vector.load %arg0[%c0, %c0_0] : memref<2x1024xf32, #tpu.memory_space<vmem>>, vector<2x1024xf32>
    %1 = arith.truncf %0 : vector<2x1024xf32> to vector<2x1024xbf16>
    %c0_1 = arith.constant 0 : index
    %c0_2 = arith.constant 0 : index
    %2 = vector.load %arg1[%c0_1, %c0_2] : memref<1024x128xbf16, #tpu.memory_space<vmem>>, vector<1024x128xbf16>
    %cst = arith.constant dense<0.000000e+00> : vector<2x128xf32>
    %3 = tpu.matmul %1, %2, %cst {dimension_numbers = #tpu.dot_dimension_numbers<[1], [0], [0], [1], [0, 0, 1, 1], [], []>} : vector<2x1024xbf16>, vector<1024x128xbf16>, vector<2x128xf32> -> vector<2x128xf32>
    %c0_3 = arith.constant 0 : index
    %c0_4 = arith.constant 0 : index
    %4 = vector.load %arg2[%c0_3, %c0_4] : memref<1x128xf32, #tpu.memory_space<vmem>>, vector<1x128xf32>
    %5 = vector.broadcast %4 : vector<1x128xf32> to vector<2x128xf32>
    %6 = arith.addf %3, %5 : vector<2x128xf32>
    %cst_5 = arith.constant 0.000000e+00 : f32
    %7 = vector.broadcast %cst_5 : f32 to vector<2x128xf32>
    %8 = arith.maximumf %6, %7 : vector<2x128xf32>
    %9 = arith.truncf %8 : vector<2x128xf32> to vector<2x128xbf16>
    %c0_6 = arith.constant 0 : index
    %c0_7 = arith.constant 0 : index
    %10 = vector.load %arg3[%c0_6, %c0_7] : memref<128x768xbf16, #tpu.memory_space<vmem>>, vector<128x768xbf16>
    %cst_8 = arith.constant dense<0.000000e+00> : vector<2x768xf32>
    %11 = tpu.matmul %9, %10, %cst_8 {dimension_numbers = #tpu.dot_dimension_numbers<[1], [0], [0], [1], [0, 0, 1, 1], [], []>} : vector<2x128xbf16>, vector<128x768xbf16>, vector<2x768xf32> -> vector<2x768xf32>
    %c0_9 = arith.constant 0 : index
    %c0_10 = arith.constant 0 : index
    %12 = vector.load %arg4[%c0_9, %c0_10] : memref<1x768xf32, #tpu.memory_space<vmem>>, vector<1x768xf32>
    %13 = vector.broadcast %12 : vector<1x768xf32> to vector<2x768xf32>
    %14 = arith.addf %11, %13 : vector<2x768xf32>
    %cst_11 = arith.constant 0.000000e+00 : f32
    %15 = vector.broadcast %cst_11 : f32 to vector<2x768xf32>
    %16 = arith.maximumf %14, %15 : vector<2x768xf32>
    %17 = arith.truncf %16 : vector<2x768xf32> to vector<2x768xbf16>
    %c0_12 = arith.constant 0 : index
    %c0_13 = arith.constant 0 : index
    %18 = vector.load %arg5[%c0_12, %c0_13] : memref<768x128xbf16, #tpu.memory_space<vmem>>, vector<768x128xbf16>
    %cst_14 = arith.constant dense<0.000000e+00> : vector<2x128xf32>
    %19 = tpu.matmul %17, %18, %cst_14 {dimension_numbers = #tpu.dot_dimension_numbers<[1], [0], [0], [1], [0, 0, 1, 1], [], []>} : vector<2x768xbf16>, vector<768x128xbf16>, vector<2x128xf32> -> vector<2x128xf32>
    %c0_15 = arith.constant 0 : index
    %c0_16 = arith.constant 0 : index
    %20 = vector.load %arg6[%c0_15, %c0_16] : memref<1x128xf32, #tpu.memory_space<vmem>>, vector<1x128xf32>
    %21 = vector.broadcast %20 : vector<1x128xf32> to vector<2x128xf32>
    %22 = arith.addf %19, %21 : vector<2x128xf32>
    %c0_17 = arith.constant 0 : index
    %c0_18 = arith.constant 0 : index
    %23 = vector.load %arg7[%c0_17, %c0_18] : memref<2x128xf32, #tpu.memory_space<vmem>>, vector<2x128xf32>
    tpu.vector_store %arg7[%c0_17, %c0_18], %22 {strides = array<i32>} : memref<2x128xf32, #tpu.memory_space<vmem>>, vector<2x128xf32>,
    return
  }
}

</mosaic_0001>

<llo_original>
// kernel: my_ensemble_forward.1
$region0: #{my_ensemble_forward.1}
  #allocation0 [shape = 'u32[]', space=smem, size = 0x4, offset = 0x4, fixed_abs, tag = 'smem constant byte address 0x4 - core index']
  #allocation1 [shape = 'u32[144,128]{1,0:T(1,128)}', space=vmem, size = 0x12000, scoped, tag = 'internal scratch']
  %s0 = inlined_call_operand.vmem [shape: f32[2,1024], index: 0, kind: input, shape index: {}]
  %s1 = inlined_call_operand.hbm [shape: bf16[1024,128], index: 1, kind: input, shape index: {}]
  %s2 = inlined_call_operand.vmem [shape: f32[1,128], index: 2, kind: input, shape index: {}]
  %s3 = inlined_call_operand.hbm [shape: bf16[128,768], index: 3, kind: input, shape index: {}]
  %s4 = inlined_call_operand.vmem [shape: f32[1,768], index: 4, kind: input, shape index: {}]
  %s5 = inlined_call_operand.hbm [shape: bf16[768,128], index: 5, kind: input, shape index: {}]
  %s6 = inlined_call_operand.vmem [shape: f32[1,128], index: 6, kind: input, shape index: {}]
  %s7 = inlined_call_operand.hbm [shape: f32[2,128], index: 7, kind: output, shape index: {}]
  %s8 = sld [smem:[#allocation0]]
  $region50: #{my_ensemble_forward.1} parent=0
    _
  %s10 = ssub.s32 1, %s8
  %s11 = scalar_select 0, %s10, %s8
  $region1: #{my_ensemble_forward.1} parent=0
    #allocation2 [shape = 'u8[262144]{0}', space=vmem, size = 0x40000, scoped, tag = 'input window, operand 1, single buffered']
    #allocation3 [shape = 's32[1]{0}', space=sflag, size = 0x4, scoped, tag = 'scoped memory for my_ensemble_forward.1']
    #allocation4 [shape = 's32[1]{0}', space=sflag, size = 0x4, scoped, tag = 'scoped memory for my_ensemble_forward.1']
    #allocation5 [shape = 'u8[196608]{0}', space=vmem, size = 0x30000, scoped, tag = 'input window, operand 3, single buffered']
    #allocation6 [shape = 's32[1]{0}', space=sflag, size = 0x4, scoped, tag = 'scoped memory for my_ensemble_forward.1']
    #allocation7 [shape = 'u8[196608]{0}', space=vmem, size = 0x30000, scoped, tag = 'input window, operand 5, single buffered']
    #allocation8 [shape = 'u8[1024]{0}', space=vmem, size = 0x400, scoped, tag = 'output window, operand 0, single buffered']
    %12 = vsyncpa [#allocation3], 0
    %13 = vsyncpa [#allocation6], 0
    %14 = vsyncpa [#allocation4], 0
    // Predicated region
    $region2: #{my_ensemble_forward.1} parent=1 // pred_check
      _
    $region3: #{my_ensemble_forward.1} parent=1 // pred_check_branch
      %16 = sbr.rel (0) target = $region5
    $region4: #{my_ensemble_forward.1} parent=1 // pred_region
      _
    $region5: #{my_ensemble_forward.1} parent=1 // pred_fallthru
      _
    // Predicated region
    $region6: #{my_ensemble_forward.1} parent=1 // pred_check
      _
    $region7: #{my_ensemble_forward.1} parent=1 // pred_check_branch
      %18 = sbr.rel (0) target = $region9
    $region8: #{my_ensemble_forward.1} parent=1 // pred_region
      %s20 = ssub.s32 8192, 8192
      %21 = vsyncadd [#allocation3], %s20
      %s22 = sshll.u32 [#allocation2], 4
      %s23 = int_to_ptr.vmem [resolvable:$true] %s22
      %28 = dma.hbm_to_vmem [thread:$0]  %s1, 8192, %s23, [#allocation3], 64, 64, 4
    $region9: #{my_ensemble_forward.1} parent=1 // pred_fallthru
      _
    // Predicated region
    $region10: #{my_ensemble_forward.1} parent=1 // pred_check
      _
    $region11: #{my_ensemble_forward.1} parent=1 // pred_check_branch
      %30 = sbr.rel (0) target = $region13
    $region12: #{my_ensemble_forward.1} parent=1 // pred_region
      _
    $region13: #{my_ensemble_forward.1} parent=1 // pred_fallthru
      _
    // Predicated region
    $region14: #{my_ensemble_forward.1} parent=1 // pred_check
      _
    $region15: #{my_ensemble_forward.1} parent=1 // pred_check_branch
      %32 = sbr.rel (0) target = $region17
    $region16: #{my_ensemble_forward.1} parent=1 // pred_region
      %s34 = ssub.s32 6144, 6144
      %35 = vsyncadd [#allocation6], %s34
      %s36 = sshll.u32 [#allocation5], 4
      %s37 = int_to_ptr.vmem [resolvable:$true] %s36
      %42 = dma.hbm_to_vmem [thread:$0]  %s3, 6144, %s37, [#allocation6], 384, 384, 24
    $region17: #{my_ensemble_forward.1} parent=1 // pred_fallthru
      _
    // Predicated region
    $region18: #{my_ensemble_forward.1} parent=1 // pred_check
      _
    $region19: #{my_ensemble_forward.1} parent=1 // pred_check_branch
      %44 = sbr.rel (0) target = $region21
    $region20: #{my_ensemble_forward.1} parent=1 // pred_region
      _
    $region21: #{my_ensemble_forward.1} parent=1 // pred_fallthru
      _
    // Predicated region
    $region22: #{my_ensemble_forward.1} parent=1 // pred_check
      _
    $region23: #{my_ensemble_forward.1} parent=1 // pred_check_branch
      %46 = sbr.rel (0) target = $region25
    $region24: #{my_ensemble_forward.1} parent=1 // pred_region
      %s48 = ssub.s32 6144, 6144
      %49 = vsyncadd [#allocation6], %s48
      %s50 = sshll.u32 [#allocation7], 4
      %s51 = int_to_ptr.vmem [resolvable:$true] %s50
      %56 = dma.hbm_to_vmem [thread:$0]  %s5, 6144, %s51, [#allocation6], 64, 64, 4
    $region25: #{my_ensemble_forward.1} parent=1 // pred_fallthru
      _
    // Predicated region
    $region26: #{my_ensemble_forward.1} parent=1 // pred_check
      _
    $region27: #{my_ensemble_forward.1} parent=1 // pred_check_branch
      %58 = sbr.rel (0) target = $region29
    $region28: #{my_ensemble_forward.1} parent=1 // pred_region
      _
    $region29: #{my_ensemble_forward.1} parent=1 // pred_fallthru
      _
    // Predicated region
    $region30: #{my_ensemble_forward.1} parent=1 // pred_check
      _
    $region31: #{my_ensemble_forward.1} parent=1 // pred_check_branch
      %60 = sbr.rel (0) target = $region33
    $region32: #{my_ensemble_forward.1} parent=1 // pred_region
      %61 = dma.done [#allocation3], 8192
    $region33: #{my_ensemble_forward.1} parent=1 // pred_fallthru
      _
    // Predicated region
    $region34: #{my_ensemble_forward.1} parent=1 // pred_check
      _
    $region35: #{my_ensemble_forward.1} parent=1 // pred_check_branch
      %63 = sbr.rel (0) target = $region37
    $region36: #{my_ensemble_forward.1} parent=1 // pred_region
      %64 = dma.done [#allocation6], 6144
    $region37: #{my_ensemble_forward.1} parent=1 // pred_fallthru
      _
    // Predicated region
    $region38: #{my_ensemble_forward.1} parent=1 // pred_check
      _
    $region39: #{my_ensemble_forward.1} parent=1 // pred_check_branch
      %66 = sbr.rel (0) target = $region41
    $region40: #{my_ensemble_forward.1} parent=1 // pred_region
      %67 = dma.done [#allocation6], 6144
    $region41: #{my_ensemble_forward.1} parent=1 // pred_fallthru
      _
    %v69 = vld [vmem:[%s0] sm:$0xff]
    %v70 = vld [vmem:[%s0 + $0x8] sm:$0xff]
    %v73 = vcombine.high %v69, %v69
    %v75 = vunpack.c.l.s4 1983009808
    %v76 = vunpack.c.0.s8 %v75
    %v77 = vlaneseq
    %v78 = vshrl.u32 %v77, 7
    %v79 = vsub.s32 %v76, %v78
    %v80 = vrot.slane %v69, %v79
    %v82 = vunpack.c.l.s4 1983009808
    %v83 = vunpack.c.0.s8 %v82
    %v84 = vlaneseq
    %v85 = vshrl.u32 %v84, 7
    %v86 = vsub.s32 %v83, %v85
    %v87 = vrot.slane %v73, %v86
    %v88 = vcombine.high %v80, %v80
    %v89 = vcombine.high %v87, %v87
    %v90 = vcombine.high %v70, %v70
    %v92 = vunpack.c.l.s4 1983009808
    %v93 = vunpack.c.0.s8 %v92
    %v94 = vlaneseq
    %v95 = vshrl.u32 %v94, 7
    %v96 = vsub.s32 %v93, %v95
    %v97 = vrot.slane %v70, %v96
    %v99 = vunpack.c.l.s4 1983009808
    %v100 = vunpack.c.0.s8 %v99
    %v101 = vlaneseq
    %v102 = vshrl.u32 %v101, 7
    %v103 = vsub.s32 %v100, %v102
    %v104 = vrot.slane %v90, %v103
    %v105 = vcombine.high %v97, %v97
    %v106 = vcombine.high %v104, %v104
    %v115 = vpack.c.bf16 %v80, %v80
    %v116 = vpack.c.bf16 %v88, %v88
    %v117 = vpack.c.bf16 %v87, %v87
    %v118 = vpack.c.bf16 %v89, %v89
    %v119 = vpack.c.bf16 %v97, %v97
    %v120 = vpack.c.bf16 %v105, %v105
    %v121 = vpack.c.bf16 %v104, %v104
    %v122 = vpack.c.bf16 %v106, %v106
    %v123 = vld [vmem:[#allocation2] sm:$0xf]
    %v124 = vld [vmem:[#allocation2 + $0x4] sm:$0xf]
    %v125 = vld [vmem:[#allocation2 + $0x8] sm:$0xf]
    %v126 = vld [vmem:[#allocation2 + $0xc] sm:$0xf]
    %v127 = vld [vmem:[#allocation2 + $0x10] sm:$0xf]
    %v128 = vld [vmem:[#allocation2 + $0x14] sm:$0xf]
    %v129 = vld [vmem:[#allocation2 + $0x18] sm:$0xf]
    %v130 = vld [vmem:[#allocation2 + $0x1c] sm:$0xf]
    %v131 = vld [vmem:[#allocation2 + $0x20] sm:$0xf]
    %v132 = vld [vmem:[#allocation2 + $0x24] sm:$0xf]
    %v133 = vld [vmem:[#allocation2 + $0x28] sm:$0xf]
    %v134 = vld [vmem:[#allocation2 + $0x2c] sm:$0xf]
    %v135 = vld [vmem:[#allocation2 + $0x30] sm:$0xf]
    %v136 = vld [vmem:[#allocation2 + $0x34] sm:$0xf]
    %v137 = vld [vmem:[#allocation2 + $0x38] sm:$0xf]
    %v138 = vld [vmem:[#allocation2 + $0x3c] sm:$0xf]
    %v139 = vld [vmem:[#allocation2 + $0x40] sm:$0xf]
    %v140 = vld [vmem:[#allocation2 + $0x44] sm:$0xf]
    %v141 = vld [vmem:[#allocation2 + $0x48] sm:$0xf]
    %v142 = vld [vmem:[#allocation2 + $0x4c] sm:$0xf]
    %v143 = vld [vmem:[#allocation2 + $0x50] sm:$0xf]
    %v144 = vld [vmem:[#allocation2 + $0x54] sm:$0xf]
    %v145 = vld [vmem:[#allocation2 + $0x58] sm:$0xf]
    %v146 = vld [vmem:[#allocation2 + $0x5c] sm:$0xf]
    %v147 = vld [vmem:[#allocation2 + $0x60] sm:$0xf]
    %v148 = vld [vmem:[#allocation2 + $0x64] sm:$0xf]
    %v149 = vld [vmem:[#allocation2 + $0x68] sm:$0xf]
    %v150 = vld [vmem:[#allocation2 + $0x6c] sm:$0xf]
    %v151 = vld [vmem:[#allocation2 + $0x70] sm:$0xf]
    %v152 = vld [vmem:[#allocation2 + $0x74] sm:$0xf]
    %v153 = vld [vmem:[#allocation2 + $0x78] sm:$0xf]
    %v154 = vld [vmem:[#allocation2 + $0x7c] sm:$0xf]
    %v155 = vld [vmem:[#allocation2 + $0x80] sm:$0xf]
    %v156 = vld [vmem:[#allocation2 + $0x84] sm:$0xf]
    %v157 = vld [vmem:[#allocation2 + $0x88] sm:$0xf]
    %v158 = vld [vmem:[#allocation2 + $0x8c] sm:$0xf]
    %v159 = vld [vmem:[#allocation2 + $0x90] sm:$0xf]
    %v160 = vld [vmem:[#allocation2 + $0x94] sm:$0xf]
    %v161 = vld [vmem:[#allocation2 + $0x98] sm:$0xf]
    %v162 = vld [vmem:[#allocation2 + $0x9c] sm:$0xf]
    %v163 = vld [vmem:[#allocation2 + $0xa0] sm:$0xf]
    %v164 = vld [vmem:[#allocation2 + $0xa4] sm:$0xf]
    %v165 = vld [vmem:[#allocation2 + $0xa8] sm:$0xf]
    %v166 = vld [vmem:[#allocation2 + $0xac] sm:$0xf]
    %v167 = vld [vmem:[#allocation2 + $0xb0] sm:$0xf]
    %v168 = vld [vmem:[#allocation2 + $0xb4] sm:$0xf]
    %v169 = vld [vmem:[#allocation2 + $0xb8] sm:$0xf]
    %v170 = vld [vmem:[#allocation2 + $0xbc] sm:$0xf]
    %v171 = vld [vmem:[#allocation2 + $0xc0] sm:$0xf]
    %v172 = vld [vmem:[#allocation2 + $0xc4] sm:$0xf]
    %v173 = vld [vmem:[#allocation2 + $0xc8] sm:$0xf]
    %v174 = vld [vmem:[#allocation2 + $0xcc] sm:$0xf]
    %v175 = vld [vmem:[#allocation2 + $0xd0] sm:$0xf]
    %v176 = vld [vmem:[#allocation2 + $0xd4] sm:$0xf]
    %v177 = vld [vmem:[#allocation2 + $0xd8] sm:$0xf]
    %v178 = vld [vmem:[#allocation2 + $0xdc] sm:$0xf]
    %v179 = vld [vmem:[#allocation2 + $0xe0] sm:$0xf]
    %v180 = vld [vmem:[#allocation2 + $0xe4] sm:$0xf]
    %v181 = vld [vmem:[#allocation2 + $0xe8] sm:$0xf]
    %v182 = vld [vmem:[#allocation2 + $0xec] sm:$0xf]
    %v183 = vld [vmem:[#allocation2 + $0xf0] sm:$0xf]
    %v184 = vld [vmem:[#allocation2 + $0xf4] sm:$0xf]
    %v185 = vld [vmem:[#allocation2 + $0xf8] sm:$0xf]
    %v186 = vld [vmem:[#allocation2 + $0xfc] sm:$0xf]
    %v187 = vld [vmem:[#allocation2 + $0x100] sm:$0xf]
    %v188 = vld [vmem:[#allocation2 + $0x104] sm:$0xf]
    %v189 = vld [vmem:[#allocation2 + $0x108] sm:$0xf]
    %v190 = vld [vmem:[#allocation2 + $0x10c] sm:$0xf]
    %v191 = vld [vmem:[#allocation2 + $0x110] sm:$0xf]
    %v192 = vld [vmem:[#allocation2 + $0x114] sm:$0xf]
    %v193 = vld [vmem:[#allocation2 + $0x118] sm:$0xf]
    %v194 = vld [vmem:[#allocation2 + $0x11c] sm:$0xf]
    %v195 = vld [vmem:[#allocation2 + $0x120] sm:$0xf]
    %v196 = vld [vmem:[#allocation2 + $0x124] sm:$0xf]
    %v197 = vld [vmem:[#allocation2 + $0x128] sm:$0xf]
    %v198 = vld [vmem:[#allocation2 + $0x12c] sm:$0xf]
    %v199 = vld [vmem:[#allocation2 + $0x130] sm:$0xf]
    %v200 = vld [vmem:[#allocation2 + $0x134] sm:$0xf]
    %v201 = vld [vmem:[#allocation2 + $0x138] sm:$0xf]
    %v202 = vld [vmem:[#allocation2 + $0x13c] sm:$0xf]
    %v203 = vld [vmem:[#allocation2 + $0x140] sm:$0xf]
    %v204 = vld [vmem:[#allocation2 + $0x144] sm:$0xf]
    %v205 = vld [vmem:[#allocation2 + $0x148] sm:$0xf]
    %v206 = vld [vmem:[#allocation2 + $0x14c] sm:$0xf]
    %v207 = vld [vmem:[#allocation2 + $0x150] sm:$0xf]
    %v208 = vld [vmem:[#allocation2 + $0x154] sm:$0xf]
    %v209 = vld [vmem:[#allocation2 + $0x158] sm:$0xf]
    %v210 = vld [vmem:[#allocation2 + $0x15c] sm:$0xf]
    %v211 = vld [vmem:[#allocation2 + $0x160] sm:$0xf]
    %v212 = vld [vmem:[#allocation2 + $0x164] sm:$0xf]
    %v213 = vld [vmem:[#allocation2 + $0x168] sm:$0xf]
    %v214 = vld [vmem:[#allocation2 + $0x16c] sm:$0xf]
    %v215 = vld [vmem:[#allocation2 + $0x170] sm:$0xf]
    %v216 = vld [vmem:[#allocation2 + $0x174] sm:$0xf]
    %v217 = vld [vmem:[#allocation2 + $0x178] sm:$0xf]
    %v218 = vld [vmem:[#allocation2 + $0x17c] sm:$0xf]
    %v219 = vld [vmem:[#allocation2 + $0x180] sm:$0xf]
    %v220 = vld [vmem:[#allocation2 + $0x184] sm:$0xf]
    %v221 = vld [vmem:[#allocation2 + $0x188] sm:$0xf]
    %v222 = vld [vmem:[#allocation2 + $0x18c] sm:$0xf]
    %v223 = vld [vmem:[#allocation2 + $0x190] sm:$0xf]
    %v224 = vld [vmem:[#allocation2 + $0x194] sm:$0xf]
    %v225 = vld [vmem:[#allocation2 + $0x198] sm:$0xf]
    %v226 = vld [vmem:[#allocation2 + $0x19c] sm:$0xf]
    %v227 = vld [vmem:[#allocation2 + $0x1a0] sm:$0xf]
    %v228 = vld [vmem:[#allocation2 + $0x1a4] sm:$0xf]
    %v229 = vld [vmem:[#allocation2 + $0x1a8] sm:$0xf]
    %v230 = vld [vmem:[#allocation2 + $0x1ac] sm:$0xf]
    %v231 = vld [vmem:[#allocation2 + $0x1b0] sm:$0xf]
    %v232 = vld [vmem:[#allocation2 + $0x1b4] sm:$0xf]
    %v233 = vld [vmem:[#allocation2 + $0x1b8] sm:$0xf]
    %v234 = vld [vmem:[#allocation2 + $0x1bc] sm:$0xf]
    %v235 = vld [vmem:[#allocation2 + $0x1c0] sm:$0xf]
    %v236 = vld [vmem:[#allocation2 + $0x1c4] sm:$0xf]
    %v237 = vld [vmem:[#allocation2 + $0x1c8] sm:$0xf]
    %v238 = vld [vmem:[#allocation2 + $0x1cc] sm:$0xf]
    %v239 = vld [vmem:[#allocation2 + $0x1d0] sm:$0xf]
    %v240 = vld [vmem:[#allocation2 + $0x1d4] sm:$0xf]
    %v241 = vld [vmem:[#allocation2 + $0x1d8] sm:$0xf]
    %v242 = vld [vmem:[#allocation2 + $0x1dc] sm:$0xf]
    %v243 = vld [vmem:[#allocation2 + $0x1e0] sm:$0xf]
    %v244 = vld [vmem:[#allocation2 + $0x1e4] sm:$0xf]
    %v245 = vld [vmem:[#allocation2 + $0x1e8] sm:$0xf]
    %v246 = vld [vmem:[#allocation2 + $0x1ec] sm:$0xf]
    %v247 = vld [vmem:[#allocation2 + $0x1f0] sm:$0xf]
    %v248 = vld [vmem:[#allocation2 + $0x1f4] sm:$0xf]
    %v249 = vld [vmem:[#allocation2 + $0x1f8] sm:$0xf]
    %v250 = vld [vmem:[#allocation2 + $0x1fc] sm:$0xf]
    %v251 = vld [vmem:[%s2] sm:$0x1]
    %v253 = vlaneseq
    %v254 = vshrl.u32 %v253, 7
    %v255 = vsub.s32 0, %v254
    %v256 = vrot.slane %v251, %v255
    %v386 = vunpack.c.l.b16 %v123
    %v387 = vunpack.c.l.b16 %v124
    %v388 = vunpack.c.l.b16 %v125
    %v389 = vunpack.c.l.b16 %v126
    %v390 = vunpack.c.l.b16 %v127
    %v391 = vunpack.c.l.b16 %v128
    %v392 = vunpack.c.l.b16 %v129
    %v393 = vunpack.c.l.b16 %v130
    %v394 = vunpack.c.l.b16 %v131
    %v395 = vunpack.c.l.b16 %v132
    %v396 = vunpack.c.l.b16 %v133
    %v397 = vunpack.c.l.b16 %v134
    %v398 = vunpack.c.l.b16 %v135
    %v399 = vunpack.c.l.b16 %v136
    %v400 = vunpack.c.l.b16 %v137
    %v401 = vunpack.c.l.b16 %v138
    %v402 = vunpack.c.l.b16 %v139
    %v403 = vunpack.c.l.b16 %v140
    %v404 = vunpack.c.l.b16 %v141
    %v405 = vunpack.c.l.b16 %v142
    %v406 = vunpack.c.l.b16 %v143
    %v407 = vunpack.c.l.b16 %v144
    %v408 = vunpack.c.l.b16 %v145
    %v409 = vunpack.c.l.b16 %v146
    %v410 = vunpack.c.l.b16 %v147
    %v411 = vunpack.c.l.b16 %v148
    %v412 = vunpack.c.l.b16 %v149
    %v413 = vunpack.c.l.b16 %v150
    %v414 = vunpack.c.l.b16 %v151
    %v415 = vunpack.c.l.b16 %v152
    %v416 = vunpack.c.l.b16 %v153
    %v417 = vunpack.c.l.b16 %v154
    %v418 = vunpack.c.l.b16 %v155
    %v419 = vunpack.c.l.b16 %v156
    %v420 = vunpack.c.l.b16 %v157
    %v421 = vunpack.c.l.b16 %v158
    %v422 = vunpack.c.l.b16 %v159
    %v423 = vunpack.c.l.b16 %v160
    %v424 = vunpack.c.l.b16 %v161
    %v425 = vunpack.c.l.b16 %v162
    %v426 = vunpack.c.l.b16 %v163
    %v427 = vunpack.c.l.b16 %v164
    %v428 = vunpack.c.l.b16 %v165
    %v429 = vunpack.c.l.b16 %v166
    %v430 = vunpack.c.l.b16 %v167
    %v431 = vunpack.c.l.b16 %v168
    %v432 = vunpack.c.l.b16 %v169
    %v433 = vunpack.c.l.b16 %v170
    %v434 = vunpack.c.l.b16 %v171
    %v435 = vunpack.c.l.b16 %v172
    %v436 = vunpack.c.l.b16 %v173
    %v437 = vunpack.c.l.b16 %v174
    %v438 = vunpack.c.l.b16 %v175
    %v439 = vunpack.c.l.b16 %v176
    %v440 = vunpack.c.l.b16 %v177
    %v441 = vunpack.c.l.b16 %v178
    %v442 = vunpack.c.l.b16 %v179
    %v443 = vunpack.c.l.b16 %v180
    %v444 = vunpack.c.l.b16 %v181
    %v445 = vunpack.c.l.b16 %v182
    %v446 = vunpack.c.l.b16 %v183
    %v447 = vunpack.c.l.b16 %v184
    %v448 = vunpack.c.l.b16 %v185
    %v449 = vunpack.c.l.b16 %v186
    %v450 = vunpack.c.l.b16 %v187
    %v451 = vunpack.c.l.b16 %v188
    %v452 = vunpack.c.l.b16 %v189
    %v453 = vunpack.c.l.b16 %v190
    %v454 = vunpack.c.l.b16 %v191
    %v455 = vunpack.c.l.b16 %v192
    %v456 = vunpack.c.l.b16 %v193
    %v457 = vunpack.c.l.b16 %v194
    %v458 = vunpack.c.l.b16 %v195
    %v459 = vunpack.c.l.b16 %v196
    %v460 = vunpack.c.l.b16 %v197
    %v461 = vunpack.c.l.b16 %v198
    %v462 = vunpack.c.l.b16 %v199
    %v463 = vunpack.c.l.b16 %v200
    %v464 = vunpack.c.l.b16 %v201
    %v465 = vunpack.c.l.b16 %v202
    %v466 = vunpack.c.l.b16 %v203
    %v467 = vunpack.c.l.b16 %v204
    %v468 = vunpack.c.l.b16 %v205
    %v469 = vunpack.c.l.b16 %v206
    %v470 = vunpack.c.l.b16 %v207
    %v471 = vunpack.c.l.b16 %v208
    %v472 = vunpack.c.l.b16 %v209
    %v473 = vunpack.c.l.b16 %v210
    %v474 = vunpack.c.l.b16 %v211
    %v475 = vunpack.c.l.b16 %v212
    %v476 = vunpack.c.l.b16 %v213
    %v477 = vunpack.c.l.b16 %v214
    %v478 = vunpack.c.l.b16 %v215
    %v479 = vunpack.c.l.b16 %v216
    %v480 = vunpack.c.l.b16 %v217
    %v481 = vunpack.c.l.b16 %v218
    %v482 = vunpack.c.l.b16 %v219
    %v483 = vunpack.c.l.b16 %v220
    %v484 = vunpack.c.l.b16 %v221
    %v485 = vunpack.c.l.b16 %v222
    %v486 = vunpack.c.l.b16 %v223
    %v487 = vunpack.c.l.b16 %v224
    %v488 = vunpack.c.l.b16 %v225
    %v489 = vunpack.c.l.b16 %v226
    %v490 = vunpack.c.l.b16 %v227
    %v491 = vunpack.c.l.b16 %v228
    %v492 = vunpack.c.l.b16 %v229
    %v493 = vunpack.c.l.b16 %v230
    %v494 = vunpack.c.l.b16 %v231
    %v495 = vunpack.c.l.b16 %v232
    %v496 = vunpack.c.l.b16 %v233
    %v497 = vunpack.c.l.b16 %v234
    %v498 = vunpack.c.l.b16 %v235
    %v499 = vunpack.c.l.b16 %v236
    %v500 = vunpack.c.l.b16 %v237
    %v501 = vunpack.c.l.b16 %v238
    %v502 = vunpack.c.l.b16 %v239
    %v503 = vunpack.c.l.b16 %v240
    %v504 = vunpack.c.l.b16 %v241
    %v505 = vunpack.c.l.b16 %v242
    %v506 = vunpack.c.l.b16 %v243
    %v507 = vunpack.c.l.b16 %v244
    %v508 = vunpack.c.l.b16 %v245
    %v509 = vunpack.c.l.b16 %v246
    %v510 = vunpack.c.l.b16 %v247
    %v511 = vunpack.c.l.b16 %v248
    %v512 = vunpack.c.l.b16 %v249
    %v513 = vunpack.c.l.b16 %v250
    %v514 = vpack.c.b16 %v387, %v386
    %v515 = vpack.c.b16 %v389, %v388
    %v516 = vpack.c.b16 %v391, %v390
    %v517 = vpack.c.b16 %v393, %v392
    %v518 = vpack.c.b16 %v395, %v394
    %v519 = vpack.c.b16 %v397, %v396
    %v520 = vpack.c.b16 %v399, %v398
    %v521 = vpack.c.b16 %v401, %v400
    %v522 = vpack.c.b16 %v403, %v402
    %v523 = vpack.c.b16 %v405, %v404
    %v524 = vpack.c.b16 %v407, %v406
    %v525 = vpack.c.b16 %v409, %v408
    %v526 = vpack.c.b16 %v411, %v410
    %v527 = vpack.c.b16 %v413, %v412
    %v528 = vpack.c.b16 %v415, %v414
    %v529 = vpack.c.b16 %v417, %v416
    %v530 = vpack.c.b16 %v419, %v418
    %v531 = vpack.c.b16 %v421, %v420
    %v532 = vpack.c.b16 %v423, %v422
    %v533 = vpack.c.b16 %v425, %v424
    %v534 = vpack.c.b16 %v427, %v426
    %v535 = vpack.c.b16 %v429, %v428
    %v536 = vpack.c.b16 %v431, %v430
    %v537 = vpack.c.b16 %v433, %v432
    %v538 = vpack.c.b16 %v435, %v434
    %v539 = vpack.c.b16 %v437, %v436
    %v540 = vpack.c.b16 %v439, %v438
    %v541 = vpack.c.b16 %v441, %v440
    %v542 = vpack.c.b16 %v443, %v442
    %v543 = vpack.c.b16 %v445, %v444
    %v544 = vpack.c.b16 %v447, %v446
    %v545 = vpack.c.b16 %v449, %v448
    %v546 = vpack.c.b16 %v451, %v450
    %v547 = vpack.c.b16 %v453, %v452
    %v548 = vpack.c.b16 %v455, %v454
    %v549 = vpack.c.b16 %v457, %v456
    %v550 = vpack.c.b16 %v459, %v458
    %v551 = vpack.c.b16 %v461, %v460
    %v552 = vpack.c.b16 %v463, %v462
    %v553 = vpack.c.b16 %v465, %v464
    %v554 = vpack.c.b16 %v467, %v466
    %v555 = vpack.c.b16 %v469, %v468
    %v556 = vpack.c.b16 %v471, %v470
    %v557 = vpack.c.b16 %v473, %v472
    %v558 = vpack.c.b16 %v475, %v474
    %v559 = vpack.c.b16 %v477, %v476
    %v560 = vpack.c.b16 %v479, %v478
    %v561 = vpack.c.b16 %v481, %v480
    %v562 = vpack.c.b16 %v483, %v482
    %v563 = vpack.c.b16 %v485, %v484
    %v564 = vpack.c.b16 %v487, %v486
    %v565 = vpack.c.b16 %v489, %v488
    %v566 = vpack.c.b16 %v491, %v490
    %v567 = vpack.c.b16 %v493, %v492
    %v568 = vpack.c.b16 %v495, %v494
    %v569 = vpack.c.b16 %v497, %v496
    %v570 = vpack.c.b16 %v499, %v498
    %v571 = vpack.c.b16 %v501, %v500
    %v572 = vpack.c.b16 %v503, %v502
    %v573 = vpack.c.b16 %v505, %v504
    %v574 = vpack.c.b16 %v507, %v506
    %v575 = vpack.c.b16 %v509, %v508
    %v576 = vpack.c.b16 %v511, %v510
    %v577 = vpack.c.b16 %v513, %v512
    %642 = vmatprep.subr.bf16.mxu0 0
    %643 = vmatpush1.bf16.msra.mxu0 %v521
    %644 = vmatprep.subr.bf16.mxu0 0
    %645 = vmatpush1.bf16.msra.mxu0 %v520
    %646 = vmatprep.subr.bf16.mxu0 0
    %647 = vmatpush1.bf16.msra.mxu0 %v519
    %648 = vmatprep.subr.bf16.mxu0 0
    %649 = vmatpush1.bf16.msra.mxu0 %v518
    %650 = vmatprep.subr.bf16.mxu0 0
    %651 = vmatpush1.bf16.msra.mxu0 %v517
    %652 = vmatprep.subr.bf16.mxu0 0
    %653 = vmatpush1.bf16.msra.mxu0 %v516
    %654 = vmatprep.subr.bf16.mxu0 0
    %655 = vmatpush1.bf16.msra.mxu0 %v515
    %656 = vmatprep.subr.bf16.mxu0 0
    %657 = vmatpush1.bf16.msra.mxu0 %v514
    %658 = vmatprep.subr.bf16.mxu0 0
    %659 = vmatpush2.bf16.msra.mxu0 %v529
    %660 = vmatprep.subr.bf16.mxu0 0
    %661 = vmatpush2.bf16.msra.mxu0 %v528
    %662 = vmatprep.subr.bf16.mxu0 0
    %663 = vmatpush2.bf16.msra.mxu0 %v527
    %664 = vmatprep.subr.bf16.mxu0 0
    %665 = vmatpush2.bf16.msra.mxu0 %v526
    %666 = vmatprep.subr.bf16.mxu0 0
    %667 = vmatpush2.bf16.msra.mxu0 %v525
    %668 = vmatprep.subr.bf16.mxu0 0
    %669 = vmatpush2.bf16.msra.mxu0 %v524
    %670 = vmatprep.subr.bf16.mxu0 0
    %671 = vmatpush2.bf16.msra.mxu0 %v523
    %672 = vmatprep.subr.bf16.mxu0 0
    %673 = vmatpush2.bf16.msra.mxu0 %v522
    %674 = vmatprep.mubr.bf16.mxu0 %v116
    %675 = vmatmul.mubr.bf16.gmra.mxu0 %v115
    %v676 = vpop.f32.mrf.mxu0
    %v677 = vadd.f32 %v256, %v676
    %v678 = vpop.f32.mrf.mxu0
    %v679 = vpop.f32.mrf.mxu0
    %v680 = vpop.f32.mrf.mxu0
    %681 = vdwg.mxu0
    %682 = vmatprep.subr.bf16.mxu0 0
    %683 = vmatpush1.bf16.msra.mxu0 %v537
    %684 = vmatprep.subr.bf16.mxu0 0
    %685 = vmatpush1.bf16.msra.mxu0 %v536
    %686 = vmatprep.subr.bf16.mxu0 0
    %687 = vmatpush1.bf16.msra.mxu0 %v535
    %688 = vmatprep.subr.bf16.mxu0 0
    %689 = vmatpush1.bf16.msra.mxu0 %v534
    %690 = vmatprep.subr.bf16.mxu0 0
    %691 = vmatpush1.bf16.msra.mxu0 %v533
    %692 = vmatprep.subr.bf16.mxu0 0
    %693 = vmatpush1.bf16.msra.mxu0 %v532
    %694 = vmatprep.subr.bf16.mxu0 0
    %695 = vmatpush1.bf16.msra.mxu0 %v531
    %696 = vmatprep.subr.bf16.mxu0 0
    %697 = vmatpush1.bf16.msra.mxu0 %v530
    %698 = vmatprep.subr.bf16.mxu0 0
    %699 = vmatpush2.bf16.msra.mxu0 %v545
    %700 = vmatprep.subr.bf16.mxu0 0
    %701 = vmatpush2.bf16.msra.mxu0 %v544
    %702 = vmatprep.subr.bf16.mxu0 0
    %703 = vmatpush2.bf16.msra.mxu0 %v543
    %704 = vmatprep.subr.bf16.mxu0 0
    %705 = vmatpush2.bf16.msra.mxu0 %v542
    %706 = vmatprep.subr.bf16.mxu0 0
    %707 = vmatpush2.bf16.msra.mxu0 %v541
    %708 = vmatprep.subr.bf16.mxu0 0
    %709 = vmatpush2.bf16.msra.mxu0 %v540
    %710 = vmatprep.subr.bf16.mxu0 0
    %711 = vmatpush2.bf16.msra.mxu0 %v539
    %712 = vmatprep.subr.bf16.mxu0 0
    %713 = vmatpush2.bf16.msra.mxu0 %v538
    %714 = vmatprep.mubr.bf16.mxu0 %v118
    %715 = vmatmul.mubr.bf16.gmra.mxu0 %v117
    %v716 = vpop.f32.mrf.mxu0
    %v717 = vadd.f32 %v677, %v716
    %v718 = vpop.f32.mrf.mxu0
    %v719 = vpop.f32.mrf.mxu0
    %v720 = vpop.f32.mrf.mxu0
    %721 = vdwg.mxu0
    %722 = vmatprep.subr.bf16.mxu0 0
    %723 = vmatpush1.bf16.msra.mxu0 %v553
    %724 = vmatprep.subr.bf16.mxu0 0
    %725 = vmatpush1.bf16.msra.mxu0 %v552
    %726 = vmatprep.subr.bf16.mxu0 0
    %727 = vmatpush1.bf16.msra.mxu0 %v551
    %728 = vmatprep.subr.bf16.mxu0 0
    %729 = vmatpush1.bf16.msra.mxu0 %v550
    %730 = vmatprep.subr.bf16.mxu0 0
    %731 = vmatpush1.bf16.msra.mxu0 %v549
    %732 = vmatprep.subr.bf16.mxu0 0
    %733 = vmatpush1.bf16.msra.mxu0 %v548
    %734 = vmatprep.subr.bf16.mxu0 0
    %735 = vmatpush1.bf16.msra.mxu0 %v547
    %736 = vmatprep.subr.bf16.mxu0 0
    %737 = vmatpush1.bf16.msra.mxu0 %v546
    %738 = vmatprep.subr.bf16.mxu0 0
    %739 = vmatpush2.bf16.msra.mxu0 %v561
    %740 = vmatprep.subr.bf16.mxu0 0
    %741 = vmatpush2.bf16.msra.mxu0 %v560
    %742 = vmatprep.subr.bf16.mxu0 0
    %743 = vmatpush2.bf16.msra.mxu0 %v559
    %744 = vmatprep.subr.bf16.mxu0 0
    %745 = vmatpush2.bf16.msra.mxu0 %v558
    %746 = vmatprep.subr.bf16.mxu0 0
    %747 = vmatpush2.bf16.msra.mxu0 %v557
    %748 = vmatprep.subr.bf16.mxu0 0
    %749 = vmatpush2.bf16.msra.mxu0 %v556
    %750 = vmatprep.subr.bf16.mxu0 0
    %751 = vmatpush2.bf16.msra.mxu0 %v555
    %752 = vmatprep.subr.bf16.mxu0 0
    %753 = vmatpush2.bf16.msra.mxu0 %v554
    %754 = vmatprep.mubr.bf16.mxu0 %v120
    %755 = vmatmul.mubr.bf16.gmra.mxu0 %v119
    %v756 = vpop.f32.mrf.mxu0
    %v757 = vadd.f32 %v717, %v756
    %v758 = vpop.f32.mrf.mxu0
    %v759 = vpop.f32.mrf.mxu0
    %v760 = vpop.f32.mrf.mxu0
    %761 = vdwg.mxu0
    %762 = vmatprep.subr.bf16.mxu0 0
    %763 = vmatpush1.bf16.msra.mxu0 %v569
    %764 = vmatprep.subr.bf16.mxu0 0
    %765 = vmatpush1.bf16.msra.mxu0 %v568
    %766 = vmatprep.subr.bf16.mxu0 0
    %767 = vmatpush1.bf16.msra.mxu0 %v567
    %768 = vmatprep.subr.bf16.mxu0 0
    %769 = vmatpush1.bf16.msra.mxu0 %v566
    %770 = vmatprep.subr.bf16.mxu0 0
    %771 = vmatpush1.bf16.msra.mxu0 %v565
    %772 = vmatprep.subr.bf16.mxu0 0
    %773 = vmatpush1.bf16.msra.mxu0 %v564
    %774 = vmatprep.subr.bf16.mxu0 0
    %775 = vmatpush1.bf16.msra.mxu0 %v563
    %776 = vmatprep.subr.bf16.mxu0 0
    %777 = vmatpush1.bf16.msra.mxu0 %v562
    %778 = vmatprep.subr.bf16.mxu0 0
    %779 = vmatpush2.bf16.msra.mxu0 %v577
    %780 = vmatprep.subr.bf16.mxu0 0
    %781 = vmatpush2.bf16.msra.mxu0 %v576
    %782 = vmatprep.subr.bf16.mxu0 0
    %783 = vmatpush2.bf16.msra.mxu0 %v575
    %784 = vmatprep.subr.bf16.mxu0 0
    %785 = vmatpush2.bf16.msra.mxu0 %v574
    %786 = vmatprep.subr.bf16.mxu0 0
    %787 = vmatpush2.bf16.msra.mxu0 %v573
    %788 = vmatprep.subr.bf16.mxu0 0
    %789 = vmatpush2.bf16.msra.mxu0 %v572
    %790 = vmatprep.subr.bf16.mxu0 0
    %791 = vmatpush2.bf16.msra.mxu0 %v571
    %792 = vmatprep.subr.bf16.mxu0 0
    %793 = vmatpush2.bf16.msra.mxu0 %v570
    %794 = vmatprep.mubr.bf16.mxu0 %v122
    %795 = vmatmul.mubr.bf16.gmra.mxu0 %v121
    %v796 = vpop.f32.mrf.mxu0
    %v797 = vadd.f32 %v757, %v796
    %v798 = vpop.f32.mrf.mxu0
    %v799 = vpop.f32.mrf.mxu0
    %v800 = vpop.f32.mrf.mxu0
    %801 = vdwg.mxu0
    %v802 = vmax.f32 %v797, 0.0
    %v803 = vpack.c.bf16 %v802, %v802
    %v804 = vld [vmem:[#allocation5] sm:$0xff]
    %v805 = vld [vmem:[#allocation5 + $0x8] sm:$0xff]
    %v806 = vld [vmem:[#allocation5 + $0x10] sm:$0xff]
    %v807 = vld [vmem:[#allocation5 + $0x18] sm:$0xff]
    %v808 = vld [vmem:[#allocation5 + $0x20] sm:$0xff]
    %v809 = vld [vmem:[#allocation5 + $0x28] sm:$0xff]
    %v810 = vld [vmem:[#allocation5 + $0x30] sm:$0xff]
    %v811 = vld [vmem:[#allocation5 + $0x38] sm:$0xff]
    %v812 = vld [vmem:[#allocation5 + $0x40] sm:$0xff]
    %v813 = vld [vmem:[#allocation5 + $0x48] sm:$0xff]
    %v814 = vld [vmem:[#allocation5 + $0x50] sm:$0xff]
    %v815 = vld [vmem:[#allocation5 + $0x58] sm:$0xff]
    %v816 = vld [vmem:[#allocation5 + $0x60] sm:$0xff]
    %v817 = vld [vmem:[#allocation5 + $0x68] sm:$0xff]
    %v818 = vld [vmem:[#allocation5 + $0x70] sm:$0xff]
    %v819 = vld [vmem:[#allocation5 + $0x78] sm:$0xff]
    %v820 = vld [vmem:[#allocation5 + $0x80] sm:$0xff]
    %v821 = vld [vmem:[#allocation5 + $0x88] sm:$0xff]
    %v822 = vld [vmem:[#allocation5 + $0x90] sm:$0xff]
    %v823 = vld [vmem:[#allocation5 + $0x98] sm:$0xff]
    %v824 = vld [vmem:[#allocation5 + $0xa0] sm:$0xff]
    %v825 = vld [vmem:[#allocation5 + $0xa8] sm:$0xff]
    %v826 = vld [vmem:[#allocation5 + $0xb0] sm:$0xff]
    %v827 = vld [vmem:[#allocation5 + $0xb8] sm:$0xff]
    %v828 = vld [vmem:[#allocation5 + $0xc0] sm:$0xff]
    %v829 = vld [vmem:[#allocation5 + $0xc8] sm:$0xff]
    %v830 = vld [vmem:[#allocation5 + $0xd0] sm:$0xff]
    %v831 = vld [vmem:[#allocation5 + $0xd8] sm:$0xff]
    %v832 = vld [vmem:[#allocation5 + $0xe0] sm:$0xff]
    %v833 = vld [vmem:[#allocation5 + $0xe8] sm:$0xff]
    %v834 = vld [vmem:[#allocation5 + $0xf0] sm:$0xff]
    %v835 = vld [vmem:[#allocation5 + $0xf8] sm:$0xff]
    %v836 = vld [vmem:[#allocation5 + $0x100] sm:$0xff]
    %v837 = vld [vmem:[#allocation5 + $0x108] sm:$0xff]
    %v838 = vld [vmem:[#allocation5 + $0x110] sm:$0xff]
    %v839 = vld [vmem:[#allocation5 + $0x118] sm:$0xff]
    %v840 = vld [vmem:[#allocation5 + $0x120] sm:$0xff]
    %v841 = vld [vmem:[#allocation5 + $0x128] sm:$0xff]
    %v842 = vld [vmem:[#allocation5 + $0x130] sm:$0xff]
    %v843 = vld [vmem:[#allocation5 + $0x138] sm:$0xff]
    %v844 = vld [vmem:[#allocation5 + $0x140] sm:$0xff]
    %v845 = vld [vmem:[#allocation5 + $0x148] sm:$0xff]
    %v846 = vld [vmem:[#allocation5 + $0x150] sm:$0xff]
    %v847 = vld [vmem:[#allocation5 + $0x158] sm:$0xff]
    %v848 = vld [vmem:[#allocation5 + $0x160] sm:$0xff]
    %v849 = vld [vmem:[#allocation5 + $0x168] sm:$0xff]
    %v850 = vld [vmem:[#allocation5 + $0x170] sm:$0xff]
    %v851 = vld [vmem:[#allocation5 + $0x178] sm:$0xff]
    %v852 = vld [vmem:[%s4] sm:$0x3f]
    %v854 = vlaneseq
    %v855 = vshrl.u32 %v854, 7
    %v856 = vsub.s32 0, %v855
    %v857 = vrot.slane %v852, %v856
    %v858 = vlaneseq
    %v859 = vshrl.u32 %v858, 7
    %v860 = vsub.s32 1, %v859
    %v861 = vrot.slane %v852, %v860
    %v862 = vlaneseq
    %v863 = vshrl.u32 %v862, 7
    %v864 = vsub.s32 2, %v863
    %v865 = vrot.slane %v852, %v864
    %v866 = vlaneseq
    %v867 = vshrl.u32 %v866, 7
    %v868 = vsub.s32 3, %v867
    %v869 = vrot.slane %v852, %v868
    %v870 = vlaneseq
    %v871 = vshrl.u32 %v870, 7
    %v872 = vsub.s32 4, %v871
    %v873 = vrot.slane %v852, %v872
    %v874 = vlaneseq
    %v875 = vshrl.u32 %v874, 7
    %v876 = vsub.s32 5, %v875
    %v877 = vrot.slane %v852, %v876
    %v932 = vunpack.c.l.b16 %v804
    %v933 = vunpack.c.h.b16 %v804
    %v934 = vunpack.c.l.b16 %v805
    %v935 = vunpack.c.h.b16 %v805
    %v936 = vunpack.c.l.b16 %v806
    %v937 = vunpack.c.h.b16 %v806
    %v938 = vunpack.c.l.b16 %v807
    %v939 = vunpack.c.h.b16 %v807
    %v940 = vunpack.c.l.b16 %v808
    %v941 = vunpack.c.h.b16 %v808
    %v942 = vunpack.c.l.b16 %v809
    %v943 = vunpack.c.h.b16 %v809
    %v944 = vunpack.c.l.b16 %v810
    %v945 = vunpack.c.h.b16 %v810
    %v946 = vunpack.c.l.b16 %v811
    %v947 = vunpack.c.h.b16 %v811
    %v948 = vunpack.c.l.b16 %v812
    %v949 = vunpack.c.h.b16 %v812
    %v950 = vunpack.c.l.b16 %v813
    %v951 = vunpack.c.h.b16 %v813
    %v952 = vunpack.c.l.b16 %v814
    %v953 = vunpack.c.h.b16 %v814
    %v954 = vunpack.c.l.b16 %v815
    %v955 = vunpack.c.h.b16 %v815
    %v956 = vunpack.c.l.b16 %v816
    %v957 = vunpack.c.h.b16 %v816
    %v958 = vunpack.c.l.b16 %v817
    %v959 = vunpack.c.h.b16 %v817
    %v960 = vunpack.c.l.b16 %v818
    %v961 = vunpack.c.h.b16 %v818
    %v962 = vunpack.c.l.b16 %v819
    %v963 = vunpack.c.h.b16 %v819
    %v964 = vunpack.c.l.b16 %v820
    %v965 = vunpack.c.h.b16 %v820
    %v966 = vunpack.c.l.b16 %v821
    %v967 = vunpack.c.h.b16 %v821
    %v968 = vunpack.c.l.b16 %v822
    %v969 = vunpack.c.h.b16 %v822
    %v970 = vunpack.c.l.b16 %v823
    %v971 = vunpack.c.h.b16 %v823
    %v972 = vunpack.c.l.b16 %v824
    %v973 = vunpack.c.h.b16 %v824
    %v974 = vunpack.c.l.b16 %v825
    %v975 = vunpack.c.h.b16 %v825
    %v976 = vunpack.c.l.b16 %v826
    %v977 = vunpack.c.h.b16 %v826
    %v978 = vunpack.c.l.b16 %v827
    %v979 = vunpack.c.h.b16 %v827
    %v980 = vunpack.c.l.b16 %v828
    %v981 = vunpack.c.h.b16 %v828
    %v982 = vunpack.c.l.b16 %v829
    %v983 = vunpack.c.h.b16 %v829
    %v984 = vunpack.c.l.b16 %v830
    %v985 = vunpack.c.h.b16 %v830
    %v986 = vunpack.c.l.b16 %v831
    %v987 = vunpack.c.h.b16 %v831
    %v988 = vunpack.c.l.b16 %v832
    %v989 = vunpack.c.h.b16 %v832
    %v990 = vunpack.c.l.b16 %v833
    %v991 = vunpack.c.h.b16 %v833
    %v992 = vunpack.c.l.b16 %v834
    %v993 = vunpack.c.h.b16 %v834
    %v994 = vunpack.c.l.b16 %v835
    %v995 = vunpack.c.h.b16 %v835
    %v996 = vunpack.c.l.b16 %v836
    %v997 = vunpack.c.h.b16 %v836
    %v998 = vunpack.c.l.b16 %v837
    %v999 = vunpack.c.h.b16 %v837
    %v1000 = vunpack.c.l.b16 %v838
    %v1001 = vunpack.c.h.b16 %v838
    %v1002 = vunpack.c.l.b16 %v839
    %v1003 = vunpack.c.h.b16 %v839
    %v1004 = vunpack.c.l.b16 %v840
    %v1005 = vunpack.c.h.b16 %v840
    %v1006 = vunpack.c.l.b16 %v841
    %v1007 = vunpack.c.h.b16 %v841
    %v1008 = vunpack.c.l.b16 %v842
    %v1009 = vunpack.c.h.b16 %v842
    %v1010 = vunpack.c.l.b16 %v843
    %v1011 = vunpack.c.h.b16 %v843
    %v1012 = vunpack.c.l.b16 %v844
    %v1013 = vunpack.c.h.b16 %v844
    %v1014 = vunpack.c.l.b16 %v845
    %v1015 = vunpack.c.h.b16 %v845
    %v1016 = vunpack.c.l.b16 %v846
    %v1017 = vunpack.c.h.b16 %v846
    %v1018 = vunpack.c.l.b16 %v847
    %v1019 = vunpack.c.h.b16 %v847
    %v1020 = vunpack.c.l.b16 %v848
    %v1021 = vunpack.c.h.b16 %v848
    %v1022 = vunpack.c.l.b16 %v849
    %v1023 = vunpack.c.h.b16 %v849
    %v1024 = vunpack.c.l.b16 %v850
    %v1025 = vunpack.c.h.b16 %v850
    %v1026 = vunpack.c.l.b16 %v851
    %v1027 = vunpack.c.h.b16 %v851
    %v1028 = vpack.c.b16 %v938, %v932
    %v1029 = vpack.c.b16 %v939, %v933
    %v1030 = vpack.c.b16 %v940, %v934
    %v1031 = vpack.c.b16 %v941, %v935
    %v1032 = vpack.c.b16 %v942, %v936
    %v1033 = vpack.c.b16 %v943, %v937
    %v1034 = vpack.c.b16 %v950, %v944
    %v1035 = vpack.c.b16 %v951, %v945
    %v1036 = vpack.c.b16 %v952, %v946
    %v1037 = vpack.c.b16 %v953, %v947
    %v1038 = vpack.c.b16 %v954, %v948
    %v1039 = vpack.c.b16 %v955, %v949
    %v1040 = vpack.c.b16 %v962, %v956
    %v1041 = vpack.c.b16 %v963, %v957
    %v1042 = vpack.c.b16 %v964, %v958
    %v1043 = vpack.c.b16 %v965, %v959
    %v1044 = vpack.c.b16 %v966, %v960
    %v1045 = vpack.c.b16 %v967, %v961
    %v1046 = vpack.c.b16 %v974, %v968
    %v1047 = vpack.c.b16 %v975, %v969
    %v1048 = vpack.c.b16 %v976, %v970
    %v1049 = vpack.c.b16 %v977, %v971
    %v1050 = vpack.c.b16 %v978, %v972
    %v1051 = vpack.c.b16 %v979, %v973
    %v1052 = vpack.c.b16 %v986, %v980
    %v1053 = vpack.c.b16 %v987, %v981
    %v1054 = vpack.c.b16 %v988, %v982
    %v1055 = vpack.c.b16 %v989, %v983
    %v1056 = vpack.c.b16 %v990, %v984
    %v1057 = vpack.c.b16 %v991, %v985
    %v1058 = vpack.c.b16 %v998, %v992
    %v1059 = vpack.c.b16 %v999, %v993
    %v1060 = vpack.c.b16 %v1000, %v994
    %v1061 = vpack.c.b16 %v1001, %v995
    %v1062 = vpack.c.b16 %v1002, %v996
    %v1063 = vpack.c.b16 %v1003, %v997
    %v1064 = vpack.c.b16 %v1010, %v1004
    %v1065 = vpack.c.b16 %v1011, %v1005
    %v1066 = vpack.c.b16 %v1012, %v1006
    %v1067 = vpack.c.b16 %v1013, %v1007
    %v1068 = vpack.c.b16 %v1014, %v1008
    %v1069 = vpack.c.b16 %v1015, %v1009
    %v1070 = vpack.c.b16 %v1022, %v1016
    %v1071 = vpack.c.b16 %v1023, %v1017
    %v1072 = vpack.c.b16 %v1024, %v1018
    %v1073 = vpack.c.b16 %v1025, %v1019
    %v1074 = vpack.c.b16 %v1026, %v1020
    %v1075 = vpack.c.b16 %v1027, %v1021
    %1124 = vmatprep.subr.bf16.mxu0 %v1071
    %1125 = vmatpush1.bf16.msra.mxu0 %v1070
    %1126 = vmatprep.subr.bf16.mxu0 %v1065
    %1127 = vmatpush1.bf16.msra.mxu0 %v1064
    %1128 = vmatprep.subr.bf16.mxu0 %v1059
    %1129 = vmatpush1.bf16.msra.mxu0 %v1058
    %1130 = vmatprep.subr.bf16.mxu0 %v1053
    %1131 = vmatpush1.bf16.msra.mxu0 %v1052
    %1132 = vmatprep.subr.bf16.mxu0 %v1047
    %1133 = vmatpush1.bf16.msra.mxu0 %v1046
    %1134 = vmatprep.subr.bf16.mxu0 %v1041
    %1135 = vmatpush1.bf16.msra.mxu0 %v1040
    %1136 = vmatprep.subr.bf16.mxu0 %v1035
    %1137 = vmatpush1.bf16.msra.mxu0 %v1034
    %1138 = vmatprep.subr.bf16.mxu0 %v1029
    %1139 = vmatpush1.bf16.msra.mxu0 %v1028
    %1140 = vmatprep.subr.bf16.mxu0 0
    %1141 = vmatpush2.bf16.msra.mxu0 0
    %1142 = vmatprep.subr.bf16.mxu0 0
    %1143 = vmatpush2.bf16.msra.mxu0 0
    %1144 = vmatprep.subr.bf16.mxu0 0
    %1145 = vmatpush2.bf16.msra.mxu0 0
    %1146 = vmatprep.subr.bf16.mxu0 0
    %1147 = vmatpush2.bf16.msra.mxu0 0
    %1148 = vmatprep.subr.bf16.mxu0 0
    %1149 = vmatpush2.bf16.msra.mxu0 0
    %1150 = vmatprep.subr.bf16.mxu0 0
    %1151 = vmatpush2.bf16.msra.mxu0 0
    %1152 = vmatprep.subr.bf16.mxu0 0
    %1153 = vmatpush2.bf16.msra.mxu0 0
    %1154 = vmatprep.subr.bf16.mxu0 0
    %1155 = vmatpush2.bf16.msra.mxu0 0
    %1156 = vmatprep.mubr.bf16.mxu0 0
    %1157 = vmatmul.mubr.bf16.gmra.mxu0 %v803
    %v1158 = vpop.f32.mrf.mxu0
    %v1159 = vadd.f32 %v857, %v1158
    %v1160 = vpop.f32.mrf.mxu0
    %v1161 = vadd.f32 %v861, %v1160
    %v1162 = vpop.f32.mrf.mxu0
    %v1163 = vpop.f32.mrf.mxu0
    %1164 = vdwg.mxu0
    %1165 = vmatprep.subr.bf16.mxu0 %v1073
    %1166 = vmatpush1.bf16.msra.mxu0 %v1072
    %1167 = vmatprep.subr.bf16.mxu0 %v1067
    %1168 = vmatpush1.bf16.msra.mxu0 %v1066
    %1169 = vmatprep.subr.bf16.mxu0 %v1061
    %1170 = vmatpush1.bf16.msra.mxu0 %v1060
    %1171 = vmatprep.subr.bf16.mxu0 %v1055
    %1172 = vmatpush1.bf16.msra.mxu0 %v1054
    %1173 = vmatprep.subr.bf16.mxu0 %v1049
    %1174 = vmatpush1.bf16.msra.mxu0 %v1048
    %1175 = vmatprep.subr.bf16.mxu0 %v1043
    %1176 = vmatpush1.bf16.msra.mxu0 %v1042
    %1177 = vmatprep.subr.bf16.mxu0 %v1037
    %1178 = vmatpush1.bf16.msra.mxu0 %v1036
    %1179 = vmatprep.subr.bf16.mxu0 %v1031
    %1180 = vmatpush1.bf16.msra.mxu0 %v1030
    %1181 = vmatprep.subr.bf16.mxu0 0
    %1182 = vmatpush2.bf16.msra.mxu0 0
    %1183 = vmatprep.subr.bf16.mxu0 0
    %1184 = vmatpush2.bf16.msra.mxu0 0
    %1185 = vmatprep.subr.bf16.mxu0 0
    %1186 = vmatpush2.bf16.msra.mxu0 0
    %1187 = vmatprep.subr.bf16.mxu0 0
    %1188 = vmatpush2.bf16.msra.mxu0 0
    %1189 = vmatprep.subr.bf16.mxu0 0
    %1190 = vmatpush2.bf16.msra.mxu0 0
    %1191 = vmatprep.subr.bf16.mxu0 0
    %1192 = vmatpush2.bf16.msra.mxu0 0
    %1193 = vmatprep.subr.bf16.mxu0 0
    %1194 = vmatpush2.bf16.msra.mxu0 0
    %1195 = vmatprep.subr.bf16.mxu0 0
    %1196 = vmatpush2.bf16.msra.mxu0 0
    %1197 = vmatprep.mubr.bf16.mxu0 0
    %1198 = vmatmul.mubr.bf16.gmra.mxu0 %v803
    %v1199 = vpop.f32.mrf.mxu0
    %v1200 = vadd.f32 %v865, %v1199
    %v1201 = vpop.f32.mrf.mxu0
    %v1202 = vadd.f32 %v869, %v1201
    %v1203 = vpop.f32.mrf.mxu0
    %v1204 = vpop.f32.mrf.mxu0
    %1205 = vdwg.mxu0
    %1206 = vmatprep.subr.bf16.mxu0 %v1075
    %1207 = vmatpush1.bf16.msra.mxu0 %v1074
    %1208 = vmatprep.subr.bf16.mxu0 %v1069
    %1209 = vmatpush1.bf16.msra.mxu0 %v1068
    %1210 = vmatprep.subr.bf16.mxu0 %v1063
    %1211 = vmatpush1.bf16.msra.mxu0 %v1062
    %1212 = vmatprep.subr.bf16.mxu0 %v1057
    %1213 = vmatpush1.bf16.msra.mxu0 %v1056
    %1214 = vmatprep.subr.bf16.mxu0 %v1051
    %1215 = vmatpush1.bf16.msra.mxu0 %v1050
    %1216 = vmatprep.subr.bf16.mxu0 %v1045
    %1217 = vmatpush1.bf16.msra.mxu0 %v1044
    %1218 = vmatprep.subr.bf16.mxu0 %v1039
    %1219 = vmatpush1.bf16.msra.mxu0 %v1038
    %1220 = vmatprep.subr.bf16.mxu0 %v1033
    %1221 = vmatpush1.bf16.msra.mxu0 %v1032
    %1222 = vmatprep.subr.bf16.mxu0 0
    %1223 = vmatpush2.bf16.msra.mxu0 0
    %1224 = vmatprep.subr.bf16.mxu0 0
    %1225 = vmatpush2.bf16.msra.mxu0 0
    %1226 = vmatprep.subr.bf16.mxu0 0
    %1227 = vmatpush2.bf16.msra.mxu0 0
    %1228 = vmatprep.subr.bf16.mxu0 0
    %1229 = vmatpush2.bf16.msra.mxu0 0
    %1230 = vmatprep.subr.bf16.mxu0 0
    %1231 = vmatpush2.bf16.msra.mxu0 0
    %1232 = vmatprep.subr.bf16.mxu0 0
    %1233 = vmatpush2.bf16.msra.mxu0 0
    %1234 = vmatprep.subr.bf16.mxu0 0
    %1235 = vmatpush2.bf16.msra.mxu0 0
    %1236 = vmatprep.subr.bf16.mxu0 0
    %1237 = vmatpush2.bf16.msra.mxu0 0
    %1238 = vmatprep.mubr.bf16.mxu0 0
    %1239 = vmatmul.mubr.bf16.gmra.mxu0 %v803
    %v1240 = vpop.f32.mrf.mxu0
    %v1241 = vadd.f32 %v873, %v1240
    %v1242 = vpop.f32.mrf.mxu0
    %v1243 = vadd.f32 %v877, %v1242
    %v1244 = vpop.f32.mrf.mxu0
    %v1245 = vpop.f32.mrf.mxu0
    %1246 = vdwg.mxu0
    %v1247 = vmax.f32 %v1159, 0.0
    %v1248 = vmax.f32 %v1161, 0.0
    %v1249 = vmax.f32 %v1200, 0.0
    %v1250 = vmax.f32 %v1202, 0.0
    %v1251 = vmax.f32 %v1241, 0.0
    %v1252 = vmax.f32 %v1243, 0.0
    %v1253 = vpack.c.bf16 %v1247, %v1247
    %v1254 = vpack.c.bf16 %v1248, %v1248
    %v1255 = vpack.c.bf16 %v1249, %v1249
    %v1256 = vpack.c.bf16 %v1250, %v1250
    %v1257 = vpack.c.bf16 %v1251, %v1251
    %v1258 = vpack.c.bf16 %v1252, %v1252
    %v1259 = vld [vmem:[#allocation7] sm:$0xf]
    %v1260 = vld [vmem:[#allocation7 + $0x4] sm:$0xf]
    %v1261 = vld [vmem:[#allocation7 + $0x8] sm:$0xf]
    %v1262 = vld [vmem:[#allocation7 + $0xc] sm:$0xf]
    %v1263 = vld [vmem:[#allocation7 + $0x10] sm:$0xf]
    %v1264 = vld [vmem:[#allocation7 + $0x14] sm:$0xf]
    %v1265 = vld [vmem:[#allocation7 + $0x18] sm:$0xf]
    %v1266 = vld [vmem:[#allocation7 + $0x1c] sm:$0xf]
    %v1267 = vld [vmem:[#allocation7 + $0x20] sm:$0xf]
    %v1268 = vld [vmem:[#allocation7 + $0x24] sm:$0xf]
    %v1269 = vld [vmem:[#allocation7 + $0x28] sm:$0xf]
    %v1270 = vld [vmem:[#allocation7 + $0x2c] sm:$0xf]
    %v1271 = vld [vmem:[#allocation7 + $0x30] sm:$0xf]
    %v1272 = vld [vmem:[#allocation7 + $0x34] sm:$0xf]
    %v1273 = vld [vmem:[#allocation7 + $0x38] sm:$0xf]
    %v1274 = vld [vmem:[#allocation7 + $0x3c] sm:$0xf]
    %v1275 = vld [vmem:[#allocation7 + $0x40] sm:$0xf]
    %v1276 = vld [vmem:[#allocation7 + $0x44] sm:$0xf]
    %v1277 = vld [vmem:[#allocation7 + $0x48] sm:$0xf]
    %v1278 = vld [vmem:[#allocation7 + $0x4c] sm:$0xf]
    %v1279 = vld [vmem:[#allocation7 + $0x50] sm:$0xf]
    %v1280 = vld [vmem:[#allocation7 + $0x54] sm:$0xf]
    %v1281 = vld [vmem:[#allocation7 + $0x58] sm:$0xf]
    %v1282 = vld [vmem:[#allocation7 + $0x5c] sm:$0xf]
    %v1283 = vld [vmem:[#allocation7 + $0x60] sm:$0xf]
    %v1284 = vld [vmem:[#allocation7 + $0x64] sm:$0xf]
    %v1285 = vld [vmem:[#allocation7 + $0x68] sm:$0xf]
    %v1286 = vld [vmem:[#allocation7 + $0x6c] sm:$0xf]
    %v1287 = vld [vmem:[#allocation7 + $0x70] sm:$0xf]
    %v1288 = vld [vmem:[#allocation7 + $0x74] sm:$0xf]
    %v1289 = vld [vmem:[#allocation7 + $0x78] sm:$0xf]
    %v1290 = vld [vmem:[#allocation7 + $0x7c] sm:$0xf]
    %v1291 = vld [vmem:[#allocation7 + $0x80] sm:$0xf]
    %v1292 = vld [vmem:[#allocation7 + $0x84] sm:$0xf]
    %v1293 = vld [vmem:[#allocation7 + $0x88] sm:$0xf]
    %v1294 = vld [vmem:[#allocation7 + $0x8c] sm:$0xf]
    %v1295 = vld [vmem:[#allocation7 + $0x90] sm:$0xf]
    %v1296 = vld [vmem:[#allocation7 + $0x94] sm:$0xf]
    %v1297 = vld [vmem:[#allocation7 + $0x98] sm:$0xf]
    %v1298 = vld [vmem:[#allocation7 + $0x9c] sm:$0xf]
    %v1299 = vld [vmem:[#allocation7 + $0xa0] sm:$0xf]
    %v1300 = vld [vmem:[#allocation7 + $0xa4] sm:$0xf]
    %v1301 = vld [vmem:[#allocation7 + $0xa8] sm:$0xf]
    %v1302 = vld [vmem:[#allocation7 + $0xac] sm:$0xf]
    %v1303 = vld [vmem:[#allocation7 + $0xb0] sm:$0xf]
    %v1304 = vld [vmem:[#allocation7 + $0xb4] sm:$0xf]
    %v1305 = vld [vmem:[#allocation7 + $0xb8] sm:$0xf]
    %v1306 = vld [vmem:[#allocation7 + $0xbc] sm:$0xf]
    %v1307 = vld [vmem:[#allocation7 + $0xc0] sm:$0xf]
    %v1308 = vld [vmem:[#allocation7 + $0xc4] sm:$0xf]
    %v1309 = vld [vmem:[#allocation7 + $0xc8] sm:$0xf]
    %v1310 = vld [vmem:[#allocation7 + $0xcc] sm:$0xf]
    %v1311 = vld [vmem:[#allocation7 + $0xd0] sm:$0xf]
    %v1312 = vld [vmem:[#allocation7 + $0xd4] sm:$0xf]
    %v1313 = vld [vmem:[#allocation7 + $0xd8] sm:$0xf]
    %v1314 = vld [vmem:[#allocation7 + $0xdc] sm:$0xf]
    %v1315 = vld [vmem:[#allocation7 + $0xe0] sm:$0xf]
    %v1316 = vld [vmem:[#allocation7 + $0xe4] sm:$0xf]
    %v1317 = vld [vmem:[#allocation7 + $0xe8] sm:$0xf]
    %v1318 = vld [vmem:[#allocation7 + $0xec] sm:$0xf]
    %v1319 = vld [vmem:[#allocation7 + $0xf0] sm:$0xf]
    %v1320 = vld [vmem:[#allocation7 + $0xf4] sm:$0xf]
    %v1321 = vld [vmem:[#allocation7 + $0xf8] sm:$0xf]
    %v1322 = vld [vmem:[#allocation7 + $0xfc] sm:$0xf]
    %v1323 = vld [vmem:[#allocation7 + $0x100] sm:$0xf]
    %v1324 = vld [vmem:[#allocation7 + $0x104] sm:$0xf]
    %v1325 = vld [vmem:[#allocation7 + $0x108] sm:$0xf]
    %v1326 = vld [vmem:[#allocation7 + $0x10c] sm:$0xf]
    %v1327 = vld [vmem:[#allocation7 + $0x110] sm:$0xf]
    %v1328 = vld [vmem:[#allocation7 + $0x114] sm:$0xf]
    %v1329 = vld [vmem:[#allocation7 + $0x118] sm:$0xf]
    %v1330 = vld [vmem:[#allocation7 + $0x11c] sm:$0xf]
    %v1331 = vld [vmem:[#allocation7 + $0x120] sm:$0xf]
    %v1332 = vld [vmem:[#allocation7 + $0x124] sm:$0xf]
    %v1333 = vld [vmem:[#allocation7 + $0x128] sm:$0xf]
    %v1334 = vld [vmem:[#allocation7 + $0x12c] sm:$0xf]
    %v1335 = vld [vmem:[#allocation7 + $0x130] sm:$0xf]
    %v1336 = vld [vmem:[#allocation7 + $0x134] sm:$0xf]
    %v1337 = vld [vmem:[#allocation7 + $0x138] sm:$0xf]
    %v1338 = vld [vmem:[#allocation7 + $0x13c] sm:$0xf]
    %v1339 = vld [vmem:[#allocation7 + $0x140] sm:$0xf]
    %v1340 = vld [vmem:[#allocation7 + $0x144] sm:$0xf]
    %v1341 = vld [vmem:[#allocation7 + $0x148] sm:$0xf]
    %v1342 = vld [vmem:[#allocation7 + $0x14c] sm:$0xf]
    %v1343 = vld [vmem:[#allocation7 + $0x150] sm:$0xf]
    %v1344 = vld [vmem:[#allocation7 + $0x154] sm:$0xf]
    %v1345 = vld [vmem:[#allocation7 + $0x158] sm:$0xf]
    %v1346 = vld [vmem:[#allocation7 + $0x15c] sm:$0xf]
    %v1347 = vld [vmem:[#allocation7 + $0x160] sm:$0xf]
    %v1348 = vld [vmem:[#allocation7 + $0x164] sm:$0xf]
    %v1349 = vld [vmem:[#allocation7 + $0x168] sm:$0xf]
    %v1350 = vld [vmem:[#allocation7 + $0x16c] sm:$0xf]
    %v1351 = vld [vmem:[#allocation7 + $0x170] sm:$0xf]
    %v1352 = vld [vmem:[#allocation7 + $0x174] sm:$0xf]
    %v1353 = vld [vmem:[#allocation7 + $0x178] sm:$0xf]
    %v1354 = vld [vmem:[#allocation7 + $0x17c] sm:$0xf]
    %v1355 = vld [vmem:[%s6] sm:$0x1]
    %v1357 = vlaneseq
    %v1358 = vshrl.u32 %v1357, 7
    %v1359 = vsub.s32 0, %v1358
    %v1360 = vrot.slane %v1355, %v1359
    %v1458 = vunpack.c.l.b16 %v1259
    %v1459 = vunpack.c.l.b16 %v1260
    %v1460 = vunpack.c.l.b16 %v1261
    %v1461 = vunpack.c.l.b16 %v1262
    %v1462 = vunpack.c.l.b16 %v1263
    %v1463 = vunpack.c.l.b16 %v1264
    %v1464 = vunpack.c.l.b16 %v1265
    %v1465 = vunpack.c.l.b16 %v1266
    %v1466 = vunpack.c.l.b16 %v1267
    %v1467 = vunpack.c.l.b16 %v1268
    %v1468 = vunpack.c.l.b16 %v1269
    %v1469 = vunpack.c.l.b16 %v1270
    %v1470 = vunpack.c.l.b16 %v1271
    %v1471 = vunpack.c.l.b16 %v1272
    %v1472 = vunpack.c.l.b16 %v1273
    %v1473 = vunpack.c.l.b16 %v1274
    %v1474 = vunpack.c.l.b16 %v1275
    %v1475 = vunpack.c.l.b16 %v1276
    %v1476 = vunpack.c.l.b16 %v1277
    %v1477 = vunpack.c.l.b16 %v1278
    %v1478 = vunpack.c.l.b16 %v1279
    %v1479 = vunpack.c.l.b16 %v1280
    %v1480 = vunpack.c.l.b16 %v1281
    %v1481 = vunpack.c.l.b16 %v1282
    %v1482 = vunpack.c.l.b16 %v1283
    %v1483 = vunpack.c.l.b16 %v1284
    %v1484 = vunpack.c.l.b16 %v1285
    %v1485 = vunpack.c.l.b16 %v1286
    %v1486 = vunpack.c.l.b16 %v1287
    %v1487 = vunpack.c.l.b16 %v1288
    %v1488 = vunpack.c.l.b16 %v1289
    %v1489 = vunpack.c.l.b16 %v1290
    %v1490 = vunpack.c.l.b16 %v1291
    %v1491 = vunpack.c.l.b16 %v1292
    %v1492 = vunpack.c.l.b16 %v1293
    %v1493 = vunpack.c.l.b16 %v1294
    %v1494 = vunpack.c.l.b16 %v1295
    %v1495 = vunpack.c.l.b16 %v1296
    %v1496 = vunpack.c.l.b16 %v1297
    %v1497 = vunpack.c.l.b16 %v1298
    %v1498 = vunpack.c.l.b16 %v1299
    %v1499 = vunpack.c.l.b16 %v1300
    %v1500 = vunpack.c.l.b16 %v1301
    %v1501 = vunpack.c.l.b16 %v1302
    %v1502 = vunpack.c.l.b16 %v1303
    %v1503 = vunpack.c.l.b16 %v1304
    %v1504 = vunpack.c.l.b16 %v1305
    %v1505 = vunpack.c.l.b16 %v1306
    %v1506 = vunpack.c.l.b16 %v1307
    %v1507 = vunpack.c.l.b16 %v1308
    %v1508 = vunpack.c.l.b16 %v1309
    %v1509 = vunpack.c.l.b16 %v1310
    %v1510 = vunpack.c.l.b16 %v1311
    %v1511 = vunpack.c.l.b16 %v1312
    %v1512 = vunpack.c.l.b16 %v1313
    %v1513 = vunpack.c.l.b16 %v1314
    %v1514 = vunpack.c.l.b16 %v1315
    %v1515 = vunpack.c.l.b16 %v1316
    %v1516 = vunpack.c.l.b16 %v1317
    %v1517 = vunpack.c.l.b16 %v1318
    %v1518 = vunpack.c.l.b16 %v1319
    %v1519 = vunpack.c.l.b16 %v1320
    %v1520 = vunpack.c.l.b16 %v1321
    %v1521 = vunpack.c.l.b16 %v1322
    %v1522 = vunpack.c.l.b16 %v1323
    %v1523 = vunpack.c.l.b16 %v1324
    %v1524 = vunpack.c.l.b16 %v1325
    %v1525 = vunpack.c.l.b16 %v1326
    %v1526 = vunpack.c.l.b16 %v1327
    %v1527 = vunpack.c.l.b16 %v1328
    %v1528 = vunpack.c.l.b16 %v1329
    %v1529 = vunpack.c.l.b16 %v1330
    %v1530 = vunpack.c.l.b16 %v1331
    %v1531 = vunpack.c.l.b16 %v1332
    %v1532 = vunpack.c.l.b16 %v1333
    %v1533 = vunpack.c.l.b16 %v1334
    %v1534 = vunpack.c.l.b16 %v1335
    %v1535 = vunpack.c.l.b16 %v1336
    %v1536 = vunpack.c.l.b16 %v1337
    %v1537 = vunpack.c.l.b16 %v1338
    %v1538 = vunpack.c.l.b16 %v1339
    %v1539 = vunpack.c.l.b16 %v1340
    %v1540 = vunpack.c.l.b16 %v1341
    %v1541 = vunpack.c.l.b16 %v1342
    %v1542 = vunpack.c.l.b16 %v1343
    %v1543 = vunpack.c.l.b16 %v1344
    %v1544 = vunpack.c.l.b16 %v1345
    %v1545 = vunpack.c.l.b16 %v1346
    %v1546 = vunpack.c.l.b16 %v1347
    %v1547 = vunpack.c.l.b16 %v1348
    %v1548 = vunpack.c.l.b16 %v1349
    %v1549 = vunpack.c.l.b16 %v1350
    %v1550 = vunpack.c.l.b16 %v1351
    %v1551 = vunpack.c.l.b16 %v1352
    %v1552 = vunpack.c.l.b16 %v1353
    %v1553 = vunpack.c.l.b16 %v1354
    %v1554 = vpack.c.b16 %v1459, %v1458
    %v1555 = vpack.c.b16 %v1461, %v1460
    %v1556 = vpack.c.b16 %v1463, %v1462
    %v1557 = vpack.c.b16 %v1465, %v1464
    %v1558 = vpack.c.b16 %v1467, %v1466
    %v1559 = vpack.c.b16 %v1469, %v1468
    %v1560 = vpack.c.b16 %v1471, %v1470
    %v1561 = vpack.c.b16 %v1473, %v1472
    %v1562 = vpack.c.b16 %v1475, %v1474
    %v1563 = vpack.c.b16 %v1477, %v1476
    %v1564 = vpack.c.b16 %v1479, %v1478
    %v1565 = vpack.c.b16 %v1481, %v1480
    %v1566 = vpack.c.b16 %v1483, %v1482
    %v1567 = vpack.c.b16 %v1485, %v1484
    %v1568 = vpack.c.b16 %v1487, %v1486
    %v1569 = vpack.c.b16 %v1489, %v1488
    %v1570 = vpack.c.b16 %v1491, %v1490
    %v1571 = vpack.c.b16 %v1493, %v1492
    %v1572 = vpack.c.b16 %v1495, %v1494
    %v1573 = vpack.c.b16 %v1497, %v1496
    %v1574 = vpack.c.b16 %v1499, %v1498
    %v1575 = vpack.c.b16 %v1501, %v1500
    %v1576 = vpack.c.b16 %v1503, %v1502
    %v1577 = vpack.c.b16 %v1505, %v1504
    %v1578 = vpack.c.b16 %v1507, %v1506
    %v1579 = vpack.c.b16 %v1509, %v1508
    %v1580 = vpack.c.b16 %v1511, %v1510
    %v1581 = vpack.c.b16 %v1513, %v1512
    %v1582 = vpack.c.b16 %v1515, %v1514
    %v1583 = vpack.c.b16 %v1517, %v1516
    %v1584 = vpack.c.b16 %v1519, %v1518
    %v1585 = vpack.c.b16 %v1521, %v1520
    %v1586 = vpack.c.b16 %v1523, %v1522
    %v1587 = vpack.c.b16 %v1525, %v1524
    %v1588 = vpack.c.b16 %v1527, %v1526
    %v1589 = vpack.c.b16 %v1529, %v1528
    %v1590 = vpack.c.b16 %v1531, %v1530
    %v1591 = vpack.c.b16 %v1533, %v1532
    %v1592 = vpack.c.b16 %v1535, %v1534
    %v1593 = vpack.c.b16 %v1537, %v1536
    %v1594 = vpack.c.b16 %v1539, %v1538
    %v1595 = vpack.c.b16 %v1541, %v1540
    %v1596 = vpack.c.b16 %v1543, %v1542
    %v1597 = vpack.c.b16 %v1545, %v1544
    %v1598 = vpack.c.b16 %v1547, %v1546
    %v1599 = vpack.c.b16 %v1549, %v1548
    %v1600 = vpack.c.b16 %v1551, %v1550
    %v1601 = vpack.c.b16 %v1553, %v1552
    %1650 = vmatprep.subr.bf16.mxu0 0
    %1651 = vmatpush1.bf16.msra.mxu0 %v1561
    %1652 = vmatprep.subr.bf16.mxu0 0
    %1653 = vmatpush1.bf16.msra.mxu0 %v1560
    %1654 = vmatprep.subr.bf16.mxu0 0
    %1655 = vmatpush1.bf16.msra.mxu0 %v1559
    %1656 = vmatprep.subr.bf16.mxu0 0
    %1657 = vmatpush1.bf16.msra.mxu0 %v1558
    %1658 = vmatprep.subr.bf16.mxu0 0
    %1659 = vmatpush1.bf16.msra.mxu0 %v1557
    %1660 = vmatprep.subr.bf16.mxu0 0
    %1661 = vmatpush1.bf16.msra.mxu0 %v1556
    %1662 = vmatprep.subr.bf16.mxu0 0
    %1663 = vmatpush1.bf16.msra.mxu0 %v1555
    %1664 = vmatprep.subr.bf16.mxu0 0
    %1665 = vmatpush1.bf16.msra.mxu0 %v1554
    %1666 = vmatprep.subr.bf16.mxu0 0
    %1667 = vmatpush2.bf16.msra.mxu0 %v1569
    %1668 = vmatprep.subr.bf16.mxu0 0
    %1669 = vmatpush2.bf16.msra.mxu0 %v1568
    %1670 = vmatprep.subr.bf16.mxu0 0
    %1671 = vmatpush2.bf16.msra.mxu0 %v1567
    %1672 = vmatprep.subr.bf16.mxu0 0
    %1673 = vmatpush2.bf16.msra.mxu0 %v1566
    %1674 = vmatprep.subr.bf16.mxu0 0
    %1675 = vmatpush2.bf16.msra.mxu0 %v1565
    %1676 = vmatprep.subr.bf16.mxu0 0
    %1677 = vmatpush2.bf16.msra.mxu0 %v1564
    %1678 = vmatprep.subr.bf16.mxu0 0
    %1679 = vmatpush2.bf16.msra.mxu0 %v1563
    %1680 = vmatprep.subr.bf16.mxu0 0
    %1681 = vmatpush2.bf16.msra.mxu0 %v1562
    %1682 = vmatprep.mubr.bf16.mxu0 %v1254
    %1683 = vmatmul.mubr.bf16.gmra.mxu0 %v1253
    %v1684 = vpop.f32.mrf.mxu0
    %v1685 = vadd.f32 %v1360, %v1684
    %v1686 = vpop.f32.mrf.mxu0
    %v1687 = vpop.f32.mrf.mxu0
    %v1688 = vpop.f32.mrf.mxu0
    %1689 = vdwg.mxu0
    %1690 = vmatprep.subr.bf16.mxu0 0
    %1691 = vmatpush1.bf16.msra.mxu0 %v1577
    %1692 = vmatprep.subr.bf16.mxu0 0
    %1693 = vmatpush1.bf16.msra.mxu0 %v1576
    %1694 = vmatprep.subr.bf16.mxu0 0
    %1695 = vmatpush1.bf16.msra.mxu0 %v1575
    %1696 = vmatprep.subr.bf16.mxu0 0
    %1697 = vmatpush1.bf16.msra.mxu0 %v1574
    %1698 = vmatprep.subr.bf16.mxu0 0
    %1699 = vmatpush1.bf16.msra.mxu0 %v1573
    %1700 = vmatprep.subr.bf16.mxu0 0
    %1701 = vmatpush1.bf16.msra.mxu0 %v1572
    %1702 = vmatprep.subr.bf16.mxu0 0
    %1703 = vmatpush1.bf16.msra.mxu0 %v1571
    %1704 = vmatprep.subr.bf16.mxu0 0
    %1705 = vmatpush1.bf16.msra.mxu0 %v1570
    %1706 = vmatprep.subr.bf16.mxu0 0
    %1707 = vmatpush2.bf16.msra.mxu0 %v1585
    %1708 = vmatprep.subr.bf16.mxu0 0
    %1709 = vmatpush2.bf16.msra.mxu0 %v1584
    %1710 = vmatprep.subr.bf16.mxu0 0
    %1711 = vmatpush2.bf16.msra.mxu0 %v1583
    %1712 = vmatprep.subr.bf16.mxu0 0
    %1713 = vmatpush2.bf16.msra.mxu0 %v1582
    %1714 = vmatprep.subr.bf16.mxu0 0
    %1715 = vmatpush2.bf16.msra.mxu0 %v1581
    %1716 = vmatprep.subr.bf16.mxu0 0
    %1717 = vmatpush2.bf16.msra.mxu0 %v1580
    %1718 = vmatprep.subr.bf16.mxu0 0
    %1719 = vmatpush2.bf16.msra.mxu0 %v1579
    %1720 = vmatprep.subr.bf16.mxu0 0
    %1721 = vmatpush2.bf16.msra.mxu0 %v1578
    %1722 = vmatprep.mubr.bf16.mxu0 %v1256
    %1723 = vmatmul.mubr.bf16.gmra.mxu0 %v1255
    %v1724 = vpop.f32.mrf.mxu0
    %v1725 = vadd.f32 %v1685, %v1724
    %v1726 = vpop.f32.mrf.mxu0
    %v1727 = vpop.f32.mrf.mxu0
    %v1728 = vpop.f32.mrf.mxu0
    %1729 = vdwg.mxu0
    %1730 = vmatprep.subr.bf16.mxu0 0
    %1731 = vmatpush1.bf16.msra.mxu0 %v1593
    %1732 = vmatprep.subr.bf16.mxu0 0
    %1733 = vmatpush1.bf16.msra.mxu0 %v1592
    %1734 = vmatprep.subr.bf16.mxu0 0
    %1735 = vmatpush1.bf16.msra.mxu0 %v1591
    %1736 = vmatprep.subr.bf16.mxu0 0
    %1737 = vmatpush1.bf16.msra.mxu0 %v1590
    %1738 = vmatprep.subr.bf16.mxu0 0
    %1739 = vmatpush1.bf16.msra.mxu0 %v1589
    %1740 = vmatprep.subr.bf16.mxu0 0
    %1741 = vmatpush1.bf16.msra.mxu0 %v1588
    %1742 = vmatprep.subr.bf16.mxu0 0
    %1743 = vmatpush1.bf16.msra.mxu0 %v1587
    %1744 = vmatprep.subr.bf16.mxu0 0
    %1745 = vmatpush1.bf16.msra.mxu0 %v1586
    %1746 = vmatprep.subr.bf16.mxu0 0
    %1747 = vmatpush2.bf16.msra.mxu0 %v1601
    %1748 = vmatprep.subr.bf16.mxu0 0
    %1749 = vmatpush2.bf16.msra.mxu0 %v1600
    %1750 = vmatprep.subr.bf16.mxu0 0
    %1751 = vmatpush2.bf16.msra.mxu0 %v1599
    %1752 = vmatprep.subr.bf16.mxu0 0
    %1753 = vmatpush2.bf16.msra.mxu0 %v1598
    %1754 = vmatprep.subr.bf16.mxu0 0
    %1755 = vmatpush2.bf16.msra.mxu0 %v1597
    %1756 = vmatprep.subr.bf16.mxu0 0
    %1757 = vmatpush2.bf16.msra.mxu0 %v1596
    %1758 = vmatprep.subr.bf16.mxu0 0
    %1759 = vmatpush2.bf16.msra.mxu0 %v1595
    %1760 = vmatprep.subr.bf16.mxu0 0
    %1761 = vmatpush2.bf16.msra.mxu0 %v1594
    %1762 = vmatprep.mubr.bf16.mxu0 %v1258
    %1763 = vmatmul.mubr.bf16.gmra.mxu0 %v1257
    %v1764 = vpop.f32.mrf.mxu0
    %v1765 = vadd.f32 %v1725, %v1764
    %v1766 = vpop.f32.mrf.mxu0
    %v1767 = vpop.f32.mrf.mxu0
    %v1768 = vpop.f32.mrf.mxu0
    %1769 = vdwg.mxu0
    %1770 = vst [vmem:[#allocation8] sm:$0x3] %v1765
    // Predicated region
    $region42: #{my_ensemble_forward.1} parent=1 // pred_check
      _
    $region43: #{my_ensemble_forward.1} parent=1 // pred_check_branch
      %1772 = sbr.rel (0) target = $region45
    $region44: #{my_ensemble_forward.1} parent=1 // pred_region
      %s1774 = ssub.s32 32, 32
      %1775 = vsyncadd [#allocation4], %s1774
      %s1777 = sshll.u32 [#allocation8], 4
      %s1778 = int_to_ptr.vmem [resolvable:$true] %s1777
      %1780 = dma.vmem_to_hbm [thread:$0]  %s1778, 32, %s7, [#allocation4]
    $region45: #{my_ensemble_forward.1} parent=1 // pred_fallthru
      _
    // Predicated region
    $region46: #{my_ensemble_forward.1} parent=1 // pred_check
      _
    $region47: #{my_ensemble_forward.1} parent=1 // pred_check_branch
      %1782 = sbr.rel (0) target = $region49
    $region48: #{my_ensemble_forward.1} parent=1 // pred_region
      %1783 = dma.done [#allocation4], 32
    $region49: #{my_ensemble_forward.1} parent=1 // pred_fallthru
      _
    %1784 = vsyncpa [#allocation3], 1
    %1785 = vsyncpa [#allocation6], 1
    %1786 = vsyncpa [#allocation4], 1

</llo_original>
